<compile_context>
chip_gen: v7x
topology: tpu7x:2x2x1
jax: 0.10.0
libtpu: 0.0.40
codegen_flags: <defaults>
</compile_context>

<pallas_src>
import functools
import math

import jax
import jax.numpy as jnp
from jax.experimental import pallas as pl
from jax.experimental.pallas import tpu as pltpu

F32 = jnp.float32


def _vmem_specs(n):
    return [pl.BlockSpec(memory_space=pltpu.MemorySpace.VMEM) for _ in range(n)]


_VMEM_OUT = pl.BlockSpec(memory_space=pltpu.MemorySpace.VMEM)


# --------------------------------------------------------------------------
# Kernel 1: RGCN (2 layers) + relu + n_hop propagation, fully fused
# --------------------------------------------------------------------------

def _graph_kernel(a_ref, adj_ref, x0_ref, w1_ref, b1_ref, w2_ref, b2_ref,
                  out_ref, *, n_rel, n_hop):
    a = a_ref[...]                                       # (R+1, N, N)

    def rgcn_layer(x, w_ref, b_ref):
        # sum_r A_r @ X @ W_r as two batched dot_generals (no per-relation dots)
        xb = jnp.broadcast_to(x[None], (n_rel,) + x.shape)
        ax = jnp.einsum("rnm,rmf->rnf", a, xb, preferred_element_type=F32)
        h3 = jnp.einsum("rnf,rfg->rng", ax, w_ref[...], preferred_element_type=F32)
        h = h3[0]
        for r in range(1, n_rel):                        # static relation count
            h = h + h3[r]
        return jnp.maximum(h + b_ref[...], 0.0)

    h = rgcn_layer(x0_ref[...], w1_ref, b1_ref)
    lg = rgcn_layer(h, w2_ref, b2_ref)                   # includes outer F.relu

    # n_hop propagation over the 3 normalized adjacencies (batched), summed.
    adj = adj_ref[...]                                   # (3, N, N)
    xs = jnp.broadcast_to(lg[None], (3,) + lg.shape)
    for _ in range(n_hop):                               # static hop count
        xs = jnp.einsum("rnm,rmf->rnf", adj, xs, preferred_element_type=F32)
    out_ref[...] = xs[0] + xs[1] + xs[2]


def graph_forward(p, label_graph, norm_adj, x0, n_hop):
    n_rel = label_graph.shape[0]
    n = x0.shape[0]
    g = p["w2"].shape[-1]
    return pl.pallas_call(
        functools.partial(_graph_kernel, n_rel=n_rel, n_hop=n_hop),
        out_shape=jax.ShapeDtypeStruct((n, g), F32),
        in_specs=_vmem_specs(7),
        out_specs=_VMEM_OUT,
    )(label_graph, norm_adj, x0, p["w1"], p["b1"], p["w2"], p["b2"])


# --------------------------------------------------------------------------
# Kernel 2: AE1 + batched AE2/3/4 + CNN(conv+relu+maxpool) + feature concat
# --------------------------------------------------------------------------

def _feature_kernel(*refs, layers):
    xemb_ref, xstk_ref, patches_ref = refs[0], refs[1], refs[2]
    out_ref = refs[-1]
    w = refs[3:-1]
    ae1 = [(w[2 * i], w[2 * i + 1]) for i in range(layers)]
    ae234 = [(w[2 * layers + 2 * i], w[2 * layers + 2 * i + 1]) for i in range(layers)]
    cw_ref, cb_ref = w[-2], w[-1]

    # TODO(synk): Encoder is undefined in the reference; stacked Linear+ReLU,
    # dropout == identity (eval).
    h1 = xemb_ref[...]                                   # (E, 2*g_d)
    for (wl, bl) in ae1:
        h1 = jnp.maximum(jnp.dot(h1, wl[...], preferred_element_type=F32) + bl[...], 0.0)

    # AE2/AE3/AE4 share shapes -> one batched encoder over a leading branch axis.
    hs = xstk_ref[...]                                   # (3, E, 2N)
    for (wl, bl) in ae234:
        hs = jnp.maximum(
            jnp.einsum("ben,bnh->beh", hs, wl[...], preferred_element_type=F32)
            + bl[...], 0.0)

    # TODO(synk): CNN_concat/config are undefined; Conv1d(C->hd2,k) + ReLU +
    # global max-pool, lowered to a batched matmul over im2col patches.
    patches = patches_ref[...]                           # (E, Lout, C*k)
    e = patches.shape[0]
    wcb = jnp.broadcast_to(cw_ref[...][None], (e,) + cw_ref.shape)
    conv = jnp.einsum("elk,ekh->elh", patches, wcb, preferred_element_type=F32)
    pooled = jnp.max(conv, axis=1) + cb_ref[...]         # (E, hd2)
    x_smile = jnp.maximum(pooled, 0.0)

    # single lane-dense store of the concatenated feature slab
    out_ref[...] = jnp.concatenate([h1, hs[0], hs[1], hs[2], x_smile], axis=1)


def feature_forward(params, x_emb, x_stk, patches, cfg):
    layers = cfg["layers"]
    e = x_emb.shape[0]
    n_fea = 4 * cfg["hd2"] + cfg["hd1"]
    args = [x_emb, x_stk, patches]
    for lyr in params["AE1"]:
        args += [lyr["w"], lyr["b"]]
    for lyr in params["AE234"]:
        args += [lyr["w"], lyr["b"]]
    args += [params["cnn"]["w"], params["cnn"]["b"]]
    return pl.pallas_call(
        functools.partial(_feature_kernel, layers=layers),
        out_shape=jax.ShapeDtypeStruct((e, n_fea), F32),
        in_specs=_vmem_specs(len(args)),
        out_specs=_VMEM_OUT,
    )(*args)


# --------------------------------------------------------------------------
# Kernels 3-6: fused MHDSC branch (cluster softmax + context + attention + out)
# --------------------------------------------------------------------------

def _mhdsc_kernel(xq_ref, xkv_ref, cw_ref, cb_ref, wq_ref, wk_ref, wv_ref, wo_ref,
                  bo_ref, out_ref, attn_ref, ctx_ref, *, heads, scale):
    # TODO(synk): MHDSC is undefined in the reference; synthesized as soft
    # cluster assignment + multi-head attention over cluster contexts.
    xkv = xkv_ref[...]                                   # (E, F)
    logits = jnp.dot(xkv, cw_ref[...], preferred_element_type=F32) + cb_ref[...]
    s = jax.nn.softmax(logits, axis=-1)                  # (E, C)
    ctx = jnp.dot(s.T, xkv, preferred_element_type=F32)  # (C, F)  (in-VMEM transpose)
    ctx_ref[...] = ctx

    xq = xq_ref[...]                                     # (E, dq)
    xqb = jnp.broadcast_to(xq[None], (heads,) + xq.shape)
    ctxb = jnp.broadcast_to(ctx[None], (heads,) + ctx.shape)
    # head-blocked weights -> batched dot_generals over the head axis
    qh = jnp.einsum("hed,hdk->hek", xqb, wq_ref[...], preferred_element_type=F32)
    kh = jnp.einsum("hcf,hfk->hck", ctxb, wk_ref[...], preferred_element_type=F32)
    vh = jnp.einsum("hcf,hfk->hck", ctxb, wv_ref[...], preferred_element_type=F32)

    sc = jnp.einsum("hek,hck->hec", qh, kh, preferred_element_type=F32) * scale
    a = jax.nn.softmax(sc, axis=-1)                      # (H, E, C)
    attn_ref[...] = a
    oh = jnp.einsum("hec,hck->hek", a, vh, preferred_element_type=F32)  # (H, E, dk)

    # merged @ Wo expressed as sum over head-blocked row blocks (no concat)
    acc = jnp.dot(oh[0], wo_ref[0], preferred_element_type=F32)
    for h in range(1, heads):                            # static head count
        acc = acc + jnp.dot(oh[h], wo_ref[h], preferred_element_type=F32)
    out_ref[...] = jnp.maximum(acc + bo_ref[...], 0.0)


def mhdsc_forward(p, x_q, x_kv, heads):
    e, f = x_kv.shape
    c = p["cluster_w"].shape[1]
    dk = f // heads
    scale = 1.0 / math.sqrt(dk)
    return pl.pallas_call(
        functools.partial(_mhdsc_kernel, heads=heads, scale=scale),
        out_shape=(
            jax.ShapeDtypeStruct((e, f), F32),
            jax.ShapeDtypeStruct((heads, e, c), F32),
            jax.ShapeDtypeStruct((c, f), F32),
        ),
        in_specs=_vmem_specs(9),
        out_specs=(_VMEM_OUT, _VMEM_OUT, _VMEM_OUT),
    )(x_q, x_kv, p["cluster_w"], p["cluster_b"], p["wq"], p["wk"], p["wv"],
      p["wo"], p["bo"])


# --------------------------------------------------------------------------
# Kernel 7: final head (implicit 5-way concat + l1 + relu + l2)
# --------------------------------------------------------------------------

def _head_kernel(x1_ref, x2_ref, x3_ref, x4_ref, w1_ref, b1_ref, w2_ref, b2_ref,
                 out_ref, *, f):
    x1 = x1_ref[...]
    x2 = x2_ref[...]
    x3 = x3_ref[...]
    x4 = x4_ref[...]
    parts = [x1, x2, x3, x4, x1 + x2 + x3 + x4]          # == concat along features
    acc = jnp.zeros((x1.shape[0], w1_ref.shape[1]), F32)
    for r, xr in enumerate(parts):                        # row-blocked W1 -> no concat
        acc = acc + jnp.dot(xr, w1_ref[r * f:(r + 1) * f, :],
                            preferred_element_type=F32)
    h = jnp.maximum(acc + b1_ref[...], 0.0)               # dropout == identity (eval)
    out_ref[...] = jnp.dot(h, w2_ref[...], preferred_element_type=F32) + b2_ref[...]


def head_forward(p1, p2, x1, x2, x3, x4, n_fea):
    e = x1.shape[0]
    r = p2["w"].shape[1]
    return pl.pallas_call(
        functools.partial(_head_kernel, f=n_fea),
        out_shape=jax.ShapeDtypeStruct((e, r), F32),
        in_specs=_vmem_specs(8),
        out_specs=_VMEM_OUT,
    )(x1, x2, x3, x4, p1["w"], p1["b"], p2["w"], p2["b"])


# --------------------------------------------------------------------------
# Parameter init (deterministic, in-script)
# --------------------------------------------------------------------------

def _init_lin(key, fan_in, fan_out):
    kw, kb = jax.random.split(key)
    lim = 1.0 / math.sqrt(fan_in)
    return {
        "w": jax.random.uniform(kw, (fan_in, fan_out), F32, -lim, lim),
        "b": jax.random.uniform(kb, (1, fan_out), F32, -lim, lim),
    }


def _init_encoder(key, in_dim, hd, layers):
    keys = jax.random.split(key, layers)
    params = [_init_lin(keys[0], in_dim, hd)]
    for i in range(1, layers):
        params.append(_init_lin(keys[i], hd, hd))
    return params


def _init_encoder_stack(key, n_branch, in_dim, hd, layers):
    keys = jax.random.split(key, layers)
    params = []
    d_in = in_dim
    for i in range(layers):
        kw, kb = jax.random.split(keys[i])
        lim = 1.0 / math.sqrt(d_in)
        params.append({
            "w": jax.random.uniform(kw, (n_branch, d_in, hd), F32, -lim, lim),
            "b": jax.random.uniform(kb, (n_branch, 1, hd), F32, -lim, lim),
        })
        d_in = hd
    return params


def _init_mhdsc(key, d_q, n_fea, heads, clusters):
    ks = jax.random.split(key, 7)
    assert n_fea % heads == 0
    dk = n_fea // heads
    lim = 1.0 / math.sqrt(n_fea)
    return {
        "cluster_w": jax.random.uniform(ks[0], (n_fea, clusters), F32, -lim, lim),
        "cluster_b": jax.random.uniform(ks[1], (1, clusters), F32, -lim, lim),
        # head-blocked projection weights (H, d, dk): avoids in-kernel lane slicing
        "wq": jax.random.normal(ks[2], (heads, d_q, dk), F32) * (1.0 / math.sqrt(d_q)),
        "wk": jax.random.normal(ks[3], (heads, n_fea, dk), F32) * lim,
        "wv": jax.random.normal(ks[4], (heads, n_fea, dk), F32) * lim,
        "wo": jax.random.normal(ks[5], (heads, dk, n_fea), F32) * (1.0 / math.sqrt(dk)),
        "bo": jax.random.uniform(ks[6], (1, n_fea), F32, -lim, lim),
    }


def init_hmgrl_params(key, cfg):
    n = cfg["n_drugs"]
    d0 = cfg["input_dim0"]
    g_d = cfg["g_d"]
    r = cfg["R"]
    hd1, hd2 = cfg["hd1"], cfg["hd2"]
    n_fea = 4 * hd2 + hd1
    n_s, n_t, n_e = cfg["N_Four_attribute"]
    c, kker = cfg["cnn_channels"], cfg["cnn_kernel"]
    n_trans = 5

    keys = jax.random.split(key, 12)
    params = {
        # TODO(synk): RGCN is undefined in the reference; 2-layer relational GCN.
        "rgcn": {
            "w1": jax.random.normal(keys[0], (r + 1, d0, d0 // 2), F32) * 0.1,
            "b1": jnp.zeros((1, d0 // 2), F32),
            "w2": jax.random.normal(keys[1], (r + 1, d0 // 2, g_d), F32) * 0.1,
            "b2": jnp.zeros((1, g_d), F32),
        },
        # Mapping1/2/3 exist in __init__ but are unused in forward -> omitted.
        "AE1": _init_encoder(keys[2], 2 * g_d, hd1, cfg["layers"]),
        # AE2/AE3/AE4 share shapes -> stacked on a leading branch axis.
        "AE234": _init_encoder_stack(keys[3], 3, 2 * n, hd2, cfg["layers"]),
        "cnn": _init_lin(keys[4], c * kker, hd2),
        "layer1": _init_mhdsc(keys[5], n_fea, n_fea, cfg["heads"], cfg["clusters"]),
        "layer2": _init_mhdsc(keys[6], n_t, n_fea, cfg["heads"], cfg["clusters"]),
        "layer3": _init_mhdsc(keys[7], n_e, n_fea, cfg["heads"], cfg["clusters"]),
        "layer4": _init_mhdsc(keys[8], n_s, n_fea, cfg["heads"], cfg["clusters"]),
        "l1": _init_lin(keys[9], n_trans * n_fea, n_trans * n_fea + r),
        "l2": _init_lin(keys[10], n_trans * n_fea + r, r),
    }
    return params


# --------------------------------------------------------------------------
# HMGRL forward
# --------------------------------------------------------------------------

def hmgrl_forward(params, cfg, label_graph, norm_adj, x_vector0, x_three_vector,
                  ddi_edge, ddi_edge_mixup, lam, drug_coding):
    n = cfg["n_drugs"]
    n_s, n_t, n_e = cfg["N_Four_attribute"]
    targets_end = n_s + n_t
    heads = cfg["heads"]
    n_fea = 4 * cfg["hd2"] + cfg["hd1"]

    # RGCN + F.relu + n_hop propagation, fused into one kernel.
    x_vector = graph_forward(params["rgcn"], label_graph, norm_adj, x_vector0,
                             cfg["n_hop"])

    # Edge gather / mixup preparation stays as XLA wrapper glue (data-dependent
    # gathers are cheap one-off ops here).
    node_id = ddi_edge.T
    node_id_m = ddi_edge_mixup.T
    true_s, true_t = x_vector0[node_id[0]], x_vector0[node_id[1]]
    false_s, false_t = x_vector0[node_id_m[0]], x_vector0[node_id_m[1]]

    x_emb = (lam * jnp.concatenate([x_vector[node_id[0]], x_vector[node_id[1]]], axis=1)
             + (1.0 - lam) * jnp.concatenate([x_vector[node_id_m[0]],
                                              x_vector[node_id_m[1]]], axis=1))

    def mix(sl):
        return (lam * jnp.concatenate([true_s[:, sl], true_t[:, sl]], axis=1)
                + (1.0 - lam) * jnp.concatenate([false_s[:, sl], false_t[:, sl]], axis=1))

    x_smiles = mix(slice(0, n))
    x_targets = mix(slice(n, 2 * n))
    x_enzymes = mix(slice(2 * n, None))
    x_stk = jnp.stack([x_smiles, x_targets, x_enzymes], axis=0)       # (3, E, 2N)

    smiles_string = (lam * jnp.concatenate([drug_coding[node_id[0]],
                                            drug_coding[node_id[1]]], axis=2)
                     + (1.0 - lam) * jnp.concatenate([drug_coding[node_id_m[0]],
                                                      drug_coding[node_id_m[1]]], axis=2))
    x_three = (lam * (x_three_vector[node_id[0]] + x_three_vector[node_id[1]])
               + (1.0 - lam) * (x_three_vector[node_id_m[0]] + x_three_vector[node_id_m[1]]))

    # TODO(synk): im2col stays as wrapper-level XLA glue; the conv matmul +
    # relu + max-pool themselves are fused inside the feature kernel.
    e, c, l2 = smiles_string.shape
    kker = cfg["cnn_kernel"]
    l_out = l2 - kker + 1
    patches = jnp.stack([smiles_string[:, :, i:i + l_out] for i in range(kker)], axis=-1)
    patches = patches.transpose(0, 2, 1, 3).reshape(e, l_out, c * kker)

    # AE1..AE4 + CNN + feature concat, fused into one kernel.
    x = feature_forward(params, x_emb, x_stk, patches, cfg)           # (E, N_Fea)

    x1, a1, c1 = mhdsc_forward(params["layer1"], x, x, heads)
    x2, a2, c2 = mhdsc_forward(params["layer2"], x_three[:, n_s:targets_end], x, heads)
    x3, a3, c3 = mhdsc_forward(params["layer3"], x_three[:, targets_end:], x, heads)
    x4, a4, c4 = mhdsc_forward(params["layer4"], x_three[:, :n_s], x, heads)
    attn = jnp.concatenate([a1, a2, a3, a4], axis=0)
    context = jnp.concatenate([c1, c2, c3, c4], axis=0)

    out = head_forward(params["l1"], params["l2"], x1, x2, x3, x4, n_fea)
    return out, attn, context


# --------------------------------------------------------------------------
# Demo
# --------------------------------------------------------------------------

if __name__ == "__main__":
    cfg = {
        "n_drugs": 8,
        "input_dim0": 24,           # = 3 * n_drugs (smiles | targets | enzymes)
        "R": 3,
        "N_Four_attribute": (6, 5, 7),
        "n_hop": 2,
        "g_d": 16,
        "hd1": 16,
        "hd2": 16,
        "layers": 2,
        "heads": 2,
        "clusters": 4,
        "cnn_channels": 4,
        "cnn_kernel": 3,
    }

    key = jax.random.PRNGKey(0)
    k_params, k_lg, k_adj, k_x0, k_x3, k_e, k_em, k_dc = jax.random.split(key, 8)

    params = init_hmgrl_params(k_params, cfg)

    n = cfg["n_drugs"]
    r = cfg["R"]
    num_edges = 10
    c_ch, l_len = cfg["cnn_channels"], 12

    label_graph = jax.random.uniform(k_lg, (r + 1, n, n), F32)
    norm_adj = jax.random.uniform(k_adj, (3, n, n), F32) / n
    x_vector0 = jax.random.uniform(k_x0, (n, cfg["input_dim0"]), F32)
    x_three_vector = jax.random.uniform(k_x3, (n, sum(cfg["N_Four_attribute"])), F32)
    ddi_edge = jax.random.randint(k_e, (num_edges, 2), 0, n, jnp.int32)
    ddi_edge_mixup = jax.random.randint(k_em, (num_edges, 2), 0, n, jnp.int32)
    drug_coding = jax.random.uniform(k_dc, (n, c_ch, l_len), F32)
    lam = 0.7

    out, attn, context = hmgrl_forward(
        params, cfg, label_graph, norm_adj, x_vector0, x_three_vector,
        ddi_edge, ddi_edge_mixup, lam, drug_coding)
    jax.block_until_ready((out, attn, context))

    assert out.shape == (num_edges, cfg["R"])
    assert attn.shape == (4 * cfg["heads"], num_edges, cfg["clusters"])
    assert context.shape == (4 * cfg["clusters"], 4 * cfg["hd2"] + cfg["hd1"])
    print("KERNEL_OK")
</pallas_src>

<mosaic_0001>
module attributes {stable_mosaic.version = 11 : i64} {
  func.func @_graph_kernel(%arg0: memref<4x8x8xf32, #tpu.memory_space<vmem>>, %arg1: memref<3x8x8xf32, #tpu.memory_space<vmem>>, %arg2: memref<8x24xf32, #tpu.memory_space<vmem>>, %arg3: memref<4x24x12xf32, #tpu.memory_space<vmem>>, %arg4: memref<1x12xf32, #tpu.memory_space<vmem>>, %arg5: memref<4x12x16xf32, #tpu.memory_space<vmem>>, %arg6: memref<1x16xf32, #tpu.memory_space<vmem>>, %arg7: memref<8x16xf32, #tpu.memory_space<vmem>>) attributes {dimension_semantics = [], scalar_prefetch = 0 : i64, scratch_operands = 0 : i64, tpu.core_type = #tpu.core_type<tc>} {
    %c0 = arith.constant 0 : index
    %c0_0 = arith.constant 0 : index
    %c0_1 = arith.constant 0 : index
    %0 = vector.load %arg0[%c0, %c0_0, %c0_1] : memref<4x8x8xf32, #tpu.memory_space<vmem>>, vector<4x8x8xf32>
    %c0_2 = arith.constant 0 : index
    %c0_3 = arith.constant 0 : index
    %1 = vector.load %arg2[%c0_2, %c0_3] : memref<8x24xf32, #tpu.memory_space<vmem>>, vector<8x24xf32>
    %2 = vector.shape_cast %1 : vector<8x24xf32> to vector<1x8x24xf32>
    %3 = vector.shape_cast %2 : vector<1x8x24xf32> to vector<1x8x24xf32>
    %4 = vector.broadcast %3 : vector<1x8x24xf32> to vector<4x8x24xf32>
    "tpu.trace_start"() <{level = 10 : i32, message = "rnm,rmf->rnf"}> : () -> ()
    %cst = arith.constant dense<0.000000e+00> : vector<4x8x24xf32>
    %5 = tpu.matmul %0, %4, %cst {dimension_numbers = #tpu.dot_dimension_numbers<[2], [1], [1], [2], [0, 0, 0, 1, 1, 2], [0], [0]>} : vector<4x8x8xf32>, vector<4x8x24xf32>, vector<4x8x24xf32> -> vector<4x8x24xf32>
    "tpu.trace_stop"() : () -> ()
    %c0_4 = arith.constant 0 : index
    %c0_5 = arith.constant 0 : index
    %c0_6 = arith.constant 0 : index
    %6 = vector.load %arg3[%c0_4, %c0_5, %c0_6] : memref<4x24x12xf32, #tpu.memory_space<vmem>>, vector<4x24x12xf32>
    "tpu.trace_start"() <{level = 10 : i32, message = "rnf,rfg->rng"}> : () -> ()
    %cst_7 = arith.constant dense<0.000000e+00> : vector<4x8x12xf32>
    %7 = tpu.matmul %5, %6, %cst_7 {dimension_numbers = #tpu.dot_dimension_numbers<[2], [1], [1], [2], [0, 0, 0, 1, 1, 2], [0], [0]>} : vector<4x8x24xf32>, vector<4x24x12xf32>, vector<4x8x12xf32> -> vector<4x8x12xf32>
    "tpu.trace_stop"() : () -> ()
    %8 = vector.extract_strided_slice %7 {offsets = [0, 0, 0], sizes = [1, 8, 12], strides = [1, 1, 1]} : vector<4x8x12xf32> to vector<1x8x12xf32>
    %9 = vector.shape_cast %8 : vector<1x8x12xf32> to vector<8x12xf32>
    %10 = vector.extract_strided_slice %7 {offsets = [1, 0, 0], sizes = [1, 8, 12], strides = [1, 1, 1]} : vector<4x8x12xf32> to vector<1x8x12xf32>
    %11 = vector.shape_cast %10 : vector<1x8x12xf32> to vector<8x12xf32>
    %12 = arith.addf %9, %11 : vector<8x12xf32>
    %13 = vector.extract_strided_slice %7 {offsets = [2, 0, 0], sizes = [1, 8, 12], strides = [1, 1, 1]} : vector<4x8x12xf32> to vector<1x8x12xf32>
    %14 = vector.shape_cast %13 : vector<1x8x12xf32> to vector<8x12xf32>
    %15 = arith.addf %12, %14 : vector<8x12xf32>
    %16 = vector.extract_strided_slice %7 {offsets = [3, 0, 0], sizes = [1, 8, 12], strides = [1, 1, 1]} : vector<4x8x12xf32> to vector<1x8x12xf32>
    %17 = vector.shape_cast %16 : vector<1x8x12xf32> to vector<8x12xf32>
    %18 = arith.addf %15, %17 : vector<8x12xf32>
    %c0_8 = arith.constant 0 : index
    %c0_9 = arith.constant 0 : index
    %19 = vector.load %arg4[%c0_8, %c0_9] : memref<1x12xf32, #tpu.memory_space<vmem>>, vector<1x12xf32>
    %20 = vector.broadcast %19 : vector<1x12xf32> to vector<8x12xf32>
    %21 = arith.addf %18, %20 : vector<8x12xf32>
    %cst_10 = arith.constant 0.000000e+00 : f32
    %22 = vector.broadcast %cst_10 : f32 to vector<8x12xf32>
    %23 = arith.maximumf %21, %22 : vector<8x12xf32>
    %24 = vector.shape_cast %23 : vector<8x12xf32> to vector<1x8x12xf32>
    %25 = vector.shape_cast %24 : vector<1x8x12xf32> to vector<1x8x12xf32>
    %26 = vector.broadcast %25 : vector<1x8x12xf32> to vector<4x8x12xf32>
    "tpu.trace_start"() <{level = 10 : i32, message = "rnm,rmf->rnf"}> : () -> ()
    %cst_11 = arith.constant dense<0.000000e+00> : vector<4x8x12xf32>
    %27 = tpu.matmul %0, %26, %cst_11 {dimension_numbers = #tpu.dot_dimension_numbers<[2], [1], [1], [2], [0, 0, 0, 1, 1, 2], [0], [0]>} : vector<4x8x8xf32>, vector<4x8x12xf32>, vector<4x8x12xf32> -> vector<4x8x12xf32>
    "tpu.trace_stop"() : () -> ()
    %c0_12 = arith.constant 0 : index
    %c0_13 = arith.constant 0 : index
    %c0_14 = arith.constant 0 : index
    %28 = vector.load %arg5[%c0_12, %c0_13, %c0_14] : memref<4x12x16xf32, #tpu.memory_space<vmem>>, vector<4x12x16xf32>
    "tpu.trace_start"() <{level = 10 : i32, message = "rnf,rfg->rng"}> : () -> ()
    %cst_15 = arith.constant dense<0.000000e+00> : vector<4x8x16xf32>
    %29 = tpu.matmul %27, %28, %cst_15 {dimension_numbers = #tpu.dot_dimension_numbers<[2], [1], [1], [2], [0, 0, 0, 1, 1, 2], [0], [0]>} : vector<4x8x12xf32>, vector<4x12x16xf32>, vector<4x8x16xf32> -> vector<4x8x16xf32>
    "tpu.trace_stop"() : () -> ()
    %30 = vector.extract_strided_slice %29 {offsets = [0, 0, 0], sizes = [1, 8, 16], strides = [1, 1, 1]} : vector<4x8x16xf32> to vector<1x8x16xf32>
    %31 = vector.shape_cast %30 : vector<1x8x16xf32> to vector<8x16xf32>
    %32 = vector.extract_strided_slice %29 {offsets = [1, 0, 0], sizes = [1, 8, 16], strides = [1, 1, 1]} : vector<4x8x16xf32> to vector<1x8x16xf32>
    %33 = vector.shape_cast %32 : vector<1x8x16xf32> to vector<8x16xf32>
    %34 = arith.addf %31, %33 : vector<8x16xf32>
    %35 = vector.extract_strided_slice %29 {offsets = [2, 0, 0], sizes = [1, 8, 16], strides = [1, 1, 1]} : vector<4x8x16xf32> to vector<1x8x16xf32>
    %36 = vector.shape_cast %35 : vector<1x8x16xf32> to vector<8x16xf32>
    %37 = arith.addf %34, %36 : vector<8x16xf32>
    %38 = vector.extract_strided_slice %29 {offsets = [3, 0, 0], sizes = [1, 8, 16], strides = [1, 1, 1]} : vector<4x8x16xf32> to vector<1x8x16xf32>
    %39 = vector.shape_cast %38 : vector<1x8x16xf32> to vector<8x16xf32>
    %40 = arith.addf %37, %39 : vector<8x16xf32>
    %c0_16 = arith.constant 0 : index
    %c0_17 = arith.constant 0 : index
    %41 = vector.load %arg6[%c0_16, %c0_17] : memref<1x16xf32, #tpu.memory_space<vmem>>, vector<1x16xf32>
    %42 = vector.broadcast %41 : vector<1x16xf32> to vector<8x16xf32>
    %43 = arith.addf %40, %42 : vector<8x16xf32>
    %cst_18 = arith.constant 0.000000e+00 : f32
    %44 = vector.broadcast %cst_18 : f32 to vector<8x16xf32>
    %45 = arith.maximumf %43, %44 : vector<8x16xf32>
    %c0_19 = arith.constant 0 : index
    %c0_20 = arith.constant 0 : index
    %c0_21 = arith.constant 0 : index
    %46 = vector.load %arg1[%c0_19, %c0_20, %c0_21] : memref<3x8x8xf32, #tpu.memory_space<vmem>>, vector<3x8x8xf32>
    %47 = vector.shape_cast %45 : vector<8x16xf32> to vector<1x8x16xf32>
    %48 = vector.shape_cast %47 : vector<1x8x16xf32> to vector<1x8x16xf32>
    %49 = vector.broadcast %48 : vector<1x8x16xf32> to vector<3x8x16xf32>
    "tpu.trace_start"() <{level = 10 : i32, message = "rnm,rmf->rnf"}> : () -> ()
    %cst_22 = arith.constant dense<0.000000e+00> : vector<3x8x16xf32>
    %50 = tpu.matmul %46, %49, %cst_22 {dimension_numbers = #tpu.dot_dimension_numbers<[2], [1], [1], [2], [0, 0, 0, 1, 1, 2], [0], [0]>} : vector<3x8x8xf32>, vector<3x8x16xf32>, vector<3x8x16xf32> -> vector<3x8x16xf32>
    %cst_23 = arith.constant dense<0.000000e+00> : vector<3x8x16xf32>
    %51 = tpu.matmul %46, %50, %cst_23 {dimension_numbers = #tpu.dot_dimension_numbers<[2], [1], [1], [2], [0, 0, 0, 1, 1, 2], [0], [0]>} : vector<3x8x8xf32>, vector<3x8x16xf32>, vector<3x8x16xf32> -> vector<3x8x16xf32>
    "tpu.trace_stop"() : () -> ()
    %52 = vector.extract_strided_slice %51 {offsets = [0, 0, 0], sizes = [1, 8, 16], strides = [1, 1, 1]} : vector<3x8x16xf32> to vector<1x8x16xf32>
    %53 = vector.shape_cast %52 : vector<1x8x16xf32> to vector<8x16xf32>
    %54 = vector.extract_strided_slice %51 {offsets = [1, 0, 0], sizes = [1, 8, 16], strides = [1, 1, 1]} : vector<3x8x16xf32> to vector<1x8x16xf32>
    %55 = vector.shape_cast %54 : vector<1x8x16xf32> to vector<8x16xf32>
    %56 = arith.addf %53, %55 : vector<8x16xf32>
    %57 = vector.extract_strided_slice %51 {offsets = [2, 0, 0], sizes = [1, 8, 16], strides = [1, 1, 1]} : vector<3x8x16xf32> to vector<1x8x16xf32>
    %58 = vector.shape_cast %57 : vector<1x8x16xf32> to vector<8x16xf32>
    %59 = arith.addf %56, %58 : vector<8x16xf32>
    %c0_24 = arith.constant 0 : index
    %c0_25 = arith.constant 0 : index
    %60 = vector.load %arg7[%c0_24, %c0_25] : memref<8x16xf32, #tpu.memory_space<vmem>>, vector<8x16xf32>
    tpu.vector_store %arg7[%c0_24, %c0_25], %59 {strides = array<i32>} : memref<8x16xf32, #tpu.memory_space<vmem>>, vector<8x16xf32>,
    return
  }
}

</mosaic_0001>

<llo_original>
// kernel: tpu_custom_call.1
$region0: #{tpu_custom_call.1}
  #allocation0 [shape = 'u32[]', space=smem, size = 0x4, offset = 0x4, fixed_abs, tag = 'smem constant byte address 0x4 - core index']
  #allocation1 [shape = 'u32[144,128]{1,0:T(1,128)}', space=vmem, size = 0x12000, scoped, tag = 'internal scratch']
  %s0 = inlined_call_operand.vmem [shape: f32[4,8,8], index: 0, kind: input, shape index: {}]
  %s1 = inlined_call_operand.vmem [shape: f32[3,8,8], index: 1, kind: input, shape index: {}]
  %s2 = inlined_call_operand.vmem [shape: f32[8,24], index: 2, kind: input, shape index: {}]
  %s3 = inlined_call_operand.vmem [shape: f32[4,24,12], index: 3, kind: input, shape index: {}]
  %s4 = inlined_call_operand.vmem [shape: f32[1,12], index: 4, kind: input, shape index: {}]
  %s5 = inlined_call_operand.vmem [shape: f32[4,12,16], index: 5, kind: input, shape index: {}]
  %s6 = inlined_call_operand.vmem [shape: f32[1,16], index: 6, kind: input, shape index: {}]
  %s7 = inlined_call_operand.hbm [shape: f32[8,16], index: 7, kind: output, shape index: {}]
  %s8 = sld [smem:[#allocation0]]
  $region38: #{tpu_custom_call.1} parent=0
    _
  %s10 = ssub.s32 1, %s8
  %s11 = scalar_select 0, %s10, %s8
  $region1: #{tpu_custom_call.1} parent=0
    #allocation2 [shape = 'u8[4096]{0}', space=vmem, size = 0x1000, scoped, tag = 'output window, operand 0, single buffered']
    #allocation3 [shape = 's32[1]{0}', space=sflag, size = 0x4, scoped, tag = 'scoped memory for tpu_custom_call.1']
    %12 = vsyncpa [#allocation3], 0
    // Predicated region
    $region2: #{tpu_custom_call.1} parent=1 // pred_check
      _
    $region3: #{tpu_custom_call.1} parent=1 // pred_check_branch
      %14 = sbr.rel (0) target = $region5
    $region4: #{tpu_custom_call.1} parent=1 // pred_region
      _
    $region5: #{tpu_custom_call.1} parent=1 // pred_fallthru
      _
    // Predicated region
    $region6: #{tpu_custom_call.1} parent=1 // pred_check
      _
    $region7: #{tpu_custom_call.1} parent=1 // pred_check_branch
      %16 = sbr.rel (0) target = $region9
    $region8: #{tpu_custom_call.1} parent=1 // pred_region
      _
    $region9: #{tpu_custom_call.1} parent=1 // pred_fallthru
      _
    // Predicated region
    $region10: #{tpu_custom_call.1} parent=1 // pred_check
      _
    $region11: #{tpu_custom_call.1} parent=1 // pred_check_branch
      %18 = sbr.rel (0) target = $region13
    $region12: #{tpu_custom_call.1} parent=1 // pred_region
      _
    $region13: #{tpu_custom_call.1} parent=1 // pred_fallthru
      _
    // Predicated region
    $region14: #{tpu_custom_call.1} parent=1 // pred_check
      _
    $region15: #{tpu_custom_call.1} parent=1 // pred_check_branch
      %20 = sbr.rel (0) target = $region17
    $region16: #{tpu_custom_call.1} parent=1 // pred_region
      _
    $region17: #{tpu_custom_call.1} parent=1 // pred_fallthru
      _
    // Predicated region
    $region18: #{tpu_custom_call.1} parent=1 // pred_check
      _
    $region19: #{tpu_custom_call.1} parent=1 // pred_check_branch
      %22 = sbr.rel (0) target = $region21
    $region20: #{tpu_custom_call.1} parent=1 // pred_region
      _
    $region21: #{tpu_custom_call.1} parent=1 // pred_fallthru
      _
    // Predicated region
    $region22: #{tpu_custom_call.1} parent=1 // pred_check
      _
    $region23: #{tpu_custom_call.1} parent=1 // pred_check_branch
      %24 = sbr.rel (0) target = $region25
    $region24: #{tpu_custom_call.1} parent=1 // pred_region
      _
    $region25: #{tpu_custom_call.1} parent=1 // pred_fallthru
      _
    // Predicated region
    $region26: #{tpu_custom_call.1} parent=1 // pred_check
      _
    $region27: #{tpu_custom_call.1} parent=1 // pred_check_branch
      %26 = sbr.rel (0) target = $region29
    $region28: #{tpu_custom_call.1} parent=1 // pred_region
      _
    $region29: #{tpu_custom_call.1} parent=1 // pred_fallthru
      _
    %v27 = vld [vmem:[%s0] sm:$0xff]
    %v28 = vld [vmem:[%s0 + $0x8] sm:$0xff]
    %v29 = vld [vmem:[%s0 + $0x10] sm:$0xff]
    %v30 = vld [vmem:[%s0 + $0x18] sm:$0xff]
    %v31 = vld [vmem:[%s2] sm:$0xff]
    %vm32 = vcmask 64512
    %v34 = vsel %vm32, %v27, 0
    %36 = vmatprep.subr.mxu0 0.0
    %37 = vmatpush1.msra.mxu0 %v31
    %38 = vmatprep.subr.mxu0 0.0
    %39 = vmatpush1.msra.mxu0 0.0
    %40 = vmatprep.subr.mxu0 0.0
    %41 = vmatpush1.msra.mxu0 0.0
    %42 = vmatprep.subr.mxu0 0.0
    %43 = vmatpush1.msra.mxu0 0.0
    %44 = vmatprep.subr.mxu0 0.0
    %45 = vmatpush1.msra.mxu0 0.0
    %46 = vmatprep.subr.mxu0 0.0
    %47 = vmatpush1.msra.mxu0 0.0
    %48 = vmatprep.subr.mxu0 0.0
    %49 = vmatpush1.msra.mxu0 0.0
    %50 = vmatprep.subr.mxu0 0.0
    %51 = vmatpush1.msra.mxu0 0.0
    %52 = vmatprep.subr.mxu0 0.0
    %53 = vmatpush1.msra.mxu0 0.0
    %54 = vmatprep.subr.mxu0 0.0
    %55 = vmatpush1.msra.mxu0 0.0
    %56 = vmatprep.subr.mxu0 0.0
    %57 = vmatpush1.msra.mxu0 0.0
    %58 = vmatprep.subr.mxu0 0.0
    %59 = vmatpush1.msra.mxu0 0.0
    %60 = vmatprep.subr.mxu0 0.0
    %61 = vmatpush1.msra.mxu0 0.0
    %62 = vmatprep.subr.mxu0 0.0
    %63 = vmatpush1.msra.mxu0 0.0
    %64 = vmatprep.subr.mxu0 0.0
    %65 = vmatpush1.msra.mxu0 0.0
    %66 = vmatprep.subr.mxu0 0.0
    %67 = vmatpush1.msra.mxu0 0.0
    %68 = vmatprep.subr.mxu0 0.0
    %69 = vmatpush1.msra.mxu0 0.0
    %70 = vmatprep.subr.mxu0 0.0
    %71 = vmatpush1.msra.mxu0 0.0
    %72 = vmatprep.subr.mxu0 0.0
    %73 = vmatpush1.msra.mxu0 0.0
    %74 = vmatprep.subr.mxu0 0.0
    %75 = vmatpush1.msra.mxu0 0.0
    %76 = vmatprep.subr.mxu0 0.0
    %77 = vmatpush1.msra.mxu0 0.0
    %78 = vmatprep.subr.mxu0 0.0
    %79 = vmatpush1.msra.mxu0 0.0
    %80 = vmatprep.subr.mxu0 0.0
    %81 = vmatpush1.msra.mxu0 0.0
    %82 = vmatprep.subr.mxu0 0.0
    %83 = vmatpush1.msra.mxu0 0.0
    %84 = vmatprep.subr.mxu0 0.0
    %85 = vmatpush1.msra.mxu0 0.0
    %86 = vmatprep.subr.mxu0 0.0
    %87 = vmatpush1.msra.mxu0 0.0
    %88 = vmatprep.subr.mxu0 0.0
    %89 = vmatpush1.msra.mxu0 0.0
    %90 = vmatprep.subr.mxu0 0.0
    %91 = vmatpush1.msra.mxu0 0.0
    %92 = vmatprep.subr.mxu0 0.0
    %93 = vmatpush1.msra.mxu0 0.0
    %94 = vmatprep.subr.mxu0 0.0
    %95 = vmatpush1.msra.mxu0 0.0
    %96 = vmatprep.subr.mxu0 0.0
    %97 = vmatpush1.msra.mxu0 0.0
    %98 = vmatprep.subr.mxu0 0.0
    %99 = vmatpush1.msra.mxu0 0.0
    %100 = vmatprep.mubr.f32.mxu0 0.0
    %101 = vmatmul.mubr.f32.gmra.mrb[0].mxu0 %v34
    %v102 = vpop.f32.mrb[0].mxu0
    %v103 = vadd.f32 0.0, %v102
    %v104 = vpop.f32.mrb[0].mxu0
    %105 = vdwg.mxu0
    %v107 = vsel %vm32, %v28, 0
    %109 = vmatprep.subr.mxu0 0.0
    %110 = vmatpush1.msra.mxu0 %v31
    %111 = vmatprep.subr.mxu0 0.0
    %112 = vmatpush1.msra.mxu0 0.0
    %113 = vmatprep.subr.mxu0 0.0
    %114 = vmatpush1.msra.mxu0 0.0
    %115 = vmatprep.subr.mxu0 0.0
    %116 = vmatpush1.msra.mxu0 0.0
    %117 = vmatprep.subr.mxu0 0.0
    %118 = vmatpush1.msra.mxu0 0.0
    %119 = vmatprep.subr.mxu0 0.0
    %120 = vmatpush1.msra.mxu0 0.0
    %121 = vmatprep.subr.mxu0 0.0
    %122 = vmatpush1.msra.mxu0 0.0
    %123 = vmatprep.subr.mxu0 0.0
    %124 = vmatpush1.msra.mxu0 0.0
    %125 = vmatprep.subr.mxu0 0.0
    %126 = vmatpush1.msra.mxu0 0.0
    %127 = vmatprep.subr.mxu0 0.0
    %128 = vmatpush1.msra.mxu0 0.0
    %129 = vmatprep.subr.mxu0 0.0
    %130 = vmatpush1.msra.mxu0 0.0
    %131 = vmatprep.subr.mxu0 0.0
    %132 = vmatpush1.msra.mxu0 0.0
    %133 = vmatprep.subr.mxu0 0.0
    %134 = vmatpush1.msra.mxu0 0.0
    %135 = vmatprep.subr.mxu0 0.0
    %136 = vmatpush1.msra.mxu0 0.0
    %137 = vmatprep.subr.mxu0 0.0
    %138 = vmatpush1.msra.mxu0 0.0
    %139 = vmatprep.subr.mxu0 0.0
    %140 = vmatpush1.msra.mxu0 0.0
    %141 = vmatprep.subr.mxu0 0.0
    %142 = vmatpush1.msra.mxu0 0.0
    %143 = vmatprep.subr.mxu0 0.0
    %144 = vmatpush1.msra.mxu0 0.0
    %145 = vmatprep.subr.mxu0 0.0
    %146 = vmatpush1.msra.mxu0 0.0
    %147 = vmatprep.subr.mxu0 0.0
    %148 = vmatpush1.msra.mxu0 0.0
    %149 = vmatprep.subr.mxu0 0.0
    %150 = vmatpush1.msra.mxu0 0.0
    %151 = vmatprep.subr.mxu0 0.0
    %152 = vmatpush1.msra.mxu0 0.0
    %153 = vmatprep.subr.mxu0 0.0
    %154 = vmatpush1.msra.mxu0 0.0
    %155 = vmatprep.subr.mxu0 0.0
    %156 = vmatpush1.msra.mxu0 0.0
    %157 = vmatprep.subr.mxu0 0.0
    %158 = vmatpush1.msra.mxu0 0.0
    %159 = vmatprep.subr.mxu0 0.0
    %160 = vmatpush1.msra.mxu0 0.0
    %161 = vmatprep.subr.mxu0 0.0
    %162 = vmatpush1.msra.mxu0 0.0
    %163 = vmatprep.subr.mxu0 0.0
    %164 = vmatpush1.msra.mxu0 0.0
    %165 = vmatprep.subr.mxu0 0.0
    %166 = vmatpush1.msra.mxu0 0.0
    %167 = vmatprep.subr.mxu0 0.0
    %168 = vmatpush1.msra.mxu0 0.0
    %169 = vmatprep.subr.mxu0 0.0
    %170 = vmatpush1.msra.mxu0 0.0
    %171 = vmatprep.subr.mxu0 0.0
    %172 = vmatpush1.msra.mxu0 0.0
    %173 = vmatprep.mubr.f32.mxu0 0.0
    %174 = vmatmul.mubr.f32.gmra.mrb[0].mxu0 %v107
    %v175 = vpop.f32.mrb[0].mxu0
    %v176 = vadd.f32 0.0, %v175
    %v177 = vpop.f32.mrb[0].mxu0
    %178 = vdwg.mxu0
    %v180 = vsel %vm32, %v29, 0
    %182 = vmatprep.subr.mxu0 0.0
    %183 = vmatpush1.msra.mxu0 %v31
    %184 = vmatprep.subr.mxu0 0.0
    %185 = vmatpush1.msra.mxu0 0.0
    %186 = vmatprep.subr.mxu0 0.0
    %187 = vmatpush1.msra.mxu0 0.0
    %188 = vmatprep.subr.mxu0 0.0
    %189 = vmatpush1.msra.mxu0 0.0
    %190 = vmatprep.subr.mxu0 0.0
    %191 = vmatpush1.msra.mxu0 0.0
    %192 = vmatprep.subr.mxu0 0.0
    %193 = vmatpush1.msra.mxu0 0.0
    %194 = vmatprep.subr.mxu0 0.0
    %195 = vmatpush1.msra.mxu0 0.0
    %196 = vmatprep.subr.mxu0 0.0
    %197 = vmatpush1.msra.mxu0 0.0
    %198 = vmatprep.subr.mxu0 0.0
    %199 = vmatpush1.msra.mxu0 0.0
    %200 = vmatprep.subr.mxu0 0.0
    %201 = vmatpush1.msra.mxu0 0.0
    %202 = vmatprep.subr.mxu0 0.0
    %203 = vmatpush1.msra.mxu0 0.0
    %204 = vmatprep.subr.mxu0 0.0
    %205 = vmatpush1.msra.mxu0 0.0
    %206 = vmatprep.subr.mxu0 0.0
    %207 = vmatpush1.msra.mxu0 0.0
    %208 = vmatprep.subr.mxu0 0.0
    %209 = vmatpush1.msra.mxu0 0.0
    %210 = vmatprep.subr.mxu0 0.0
    %211 = vmatpush1.msra.mxu0 0.0
    %212 = vmatprep.subr.mxu0 0.0
    %213 = vmatpush1.msra.mxu0 0.0
    %214 = vmatprep.subr.mxu0 0.0
    %215 = vmatpush1.msra.mxu0 0.0
    %216 = vmatprep.subr.mxu0 0.0
    %217 = vmatpush1.msra.mxu0 0.0
    %218 = vmatprep.subr.mxu0 0.0
    %219 = vmatpush1.msra.mxu0 0.0
    %220 = vmatprep.subr.mxu0 0.0
    %221 = vmatpush1.msra.mxu0 0.0
    %222 = vmatprep.subr.mxu0 0.0
    %223 = vmatpush1.msra.mxu0 0.0
    %224 = vmatprep.subr.mxu0 0.0
    %225 = vmatpush1.msra.mxu0 0.0
    %226 = vmatprep.subr.mxu0 0.0
    %227 = vmatpush1.msra.mxu0 0.0
    %228 = vmatprep.subr.mxu0 0.0
    %229 = vmatpush1.msra.mxu0 0.0
    %230 = vmatprep.subr.mxu0 0.0
    %231 = vmatpush1.msra.mxu0 0.0
    %232 = vmatprep.subr.mxu0 0.0
    %233 = vmatpush1.msra.mxu0 0.0
    %234 = vmatprep.subr.mxu0 0.0
    %235 = vmatpush1.msra.mxu0 0.0
    %236 = vmatprep.subr.mxu0 0.0
    %237 = vmatpush1.msra.mxu0 0.0
    %238 = vmatprep.subr.mxu0 0.0
    %239 = vmatpush1.msra.mxu0 0.0
    %240 = vmatprep.subr.mxu0 0.0
    %241 = vmatpush1.msra.mxu0 0.0
    %242 = vmatprep.subr.mxu0 0.0
    %243 = vmatpush1.msra.mxu0 0.0
    %244 = vmatprep.subr.mxu0 0.0
    %245 = vmatpush1.msra.mxu0 0.0
    %246 = vmatprep.mubr.f32.mxu0 0.0
    %247 = vmatmul.mubr.f32.gmra.mrb[0].mxu0 %v180
    %v248 = vpop.f32.mrb[0].mxu0
    %v249 = vadd.f32 0.0, %v248
    %v250 = vpop.f32.mrb[0].mxu0
    %251 = vdwg.mxu0
    %v253 = vsel %vm32, %v30, 0
    %255 = vmatprep.subr.mxu0 0.0
    %256 = vmatpush1.msra.mxu0 %v31
    %257 = vmatprep.subr.mxu0 0.0
    %258 = vmatpush1.msra.mxu0 0.0
    %259 = vmatprep.subr.mxu0 0.0
    %260 = vmatpush1.msra.mxu0 0.0
    %261 = vmatprep.subr.mxu0 0.0
    %262 = vmatpush1.msra.mxu0 0.0
    %263 = vmatprep.subr.mxu0 0.0
    %264 = vmatpush1.msra.mxu0 0.0
    %265 = vmatprep.subr.mxu0 0.0
    %266 = vmatpush1.msra.mxu0 0.0
    %267 = vmatprep.subr.mxu0 0.0
    %268 = vmatpush1.msra.mxu0 0.0
    %269 = vmatprep.subr.mxu0 0.0
    %270 = vmatpush1.msra.mxu0 0.0
    %271 = vmatprep.subr.mxu0 0.0
    %272 = vmatpush1.msra.mxu0 0.0
    %273 = vmatprep.subr.mxu0 0.0
    %274 = vmatpush1.msra.mxu0 0.0
    %275 = vmatprep.subr.mxu0 0.0
    %276 = vmatpush1.msra.mxu0 0.0
    %277 = vmatprep.subr.mxu0 0.0
    %278 = vmatpush1.msra.mxu0 0.0
    %279 = vmatprep.subr.mxu0 0.0
    %280 = vmatpush1.msra.mxu0 0.0
    %281 = vmatprep.subr.mxu0 0.0
    %282 = vmatpush1.msra.mxu0 0.0
    %283 = vmatprep.subr.mxu0 0.0
    %284 = vmatpush1.msra.mxu0 0.0
    %285 = vmatprep.subr.mxu0 0.0
    %286 = vmatpush1.msra.mxu0 0.0
    %287 = vmatprep.subr.mxu0 0.0
    %288 = vmatpush1.msra.mxu0 0.0
    %289 = vmatprep.subr.mxu0 0.0
    %290 = vmatpush1.msra.mxu0 0.0
    %291 = vmatprep.subr.mxu0 0.0
    %292 = vmatpush1.msra.mxu0 0.0
    %293 = vmatprep.subr.mxu0 0.0
    %294 = vmatpush1.msra.mxu0 0.0
    %295 = vmatprep.subr.mxu0 0.0
    %296 = vmatpush1.msra.mxu0 0.0
    %297 = vmatprep.subr.mxu0 0.0
    %298 = vmatpush1.msra.mxu0 0.0
    %299 = vmatprep.subr.mxu0 0.0
    %300 = vmatpush1.msra.mxu0 0.0
    %301 = vmatprep.subr.mxu0 0.0
    %302 = vmatpush1.msra.mxu0 0.0
    %303 = vmatprep.subr.mxu0 0.0
    %304 = vmatpush1.msra.mxu0 0.0
    %305 = vmatprep.subr.mxu0 0.0
    %306 = vmatpush1.msra.mxu0 0.0
    %307 = vmatprep.subr.mxu0 0.0
    %308 = vmatpush1.msra.mxu0 0.0
    %309 = vmatprep.subr.mxu0 0.0
    %310 = vmatpush1.msra.mxu0 0.0
    %311 = vmatprep.subr.mxu0 0.0
    %312 = vmatpush1.msra.mxu0 0.0
    %313 = vmatprep.subr.mxu0 0.0
    %314 = vmatpush1.msra.mxu0 0.0
    %315 = vmatprep.subr.mxu0 0.0
    %316 = vmatpush1.msra.mxu0 0.0
    %317 = vmatprep.subr.mxu0 0.0
    %318 = vmatpush1.msra.mxu0 0.0
    %319 = vmatprep.mubr.f32.mxu0 0.0
    %320 = vmatmul.mubr.f32.gmra.mrb[0].mxu0 %v253
    %v321 = vpop.f32.mrb[0].mxu0
    %v322 = vadd.f32 0.0, %v321
    %v323 = vpop.f32.mrb[0].mxu0
    %324 = vdwg.mxu0
    %v325 = vld [vmem:[%s3] sm:$0xff]
    %v326 = vld [vmem:[%s3 + $0x8] sm:$0xff]
    %v327 = vld [vmem:[%s3 + $0x10] sm:$0xff]
    %v328 = vld [vmem:[%s3 + $0x18] sm:$0xff]
    %v329 = vld [vmem:[%s3 + $0x20] sm:$0xff]
    %v330 = vld [vmem:[%s3 + $0x28] sm:$0xff]
    %v331 = vld [vmem:[%s3 + $0x30] sm:$0xff]
    %v332 = vld [vmem:[%s3 + $0x38] sm:$0xff]
    %v333 = vld [vmem:[%s3 + $0x40] sm:$0xff]
    %v334 = vld [vmem:[%s3 + $0x48] sm:$0xff]
    %v335 = vld [vmem:[%s3 + $0x50] sm:$0xff]
    %v336 = vld [vmem:[%s3 + $0x58] sm:$0xff]
    %vm337 = vcmask 195584
    %v339 = vsel %vm337, %v103, 0
    %341 = vmatprep.subr.mxu0 0.0
    %342 = vmatpush1.msra.mxu0 %v325
    %343 = vmatprep.subr.mxu0 0.0
    %344 = vmatpush1.msra.mxu0 %v326
    %345 = vmatprep.subr.mxu0 0.0
    %346 = vmatpush1.msra.mxu0 %v327
    %347 = vmatprep.subr.mxu0 0.0
    %348 = vmatpush1.msra.mxu0 0.0
    %349 = vmatprep.subr.mxu0 0.0
    %350 = vmatpush1.msra.mxu0 0.0
    %351 = vmatprep.subr.mxu0 0.0
    %352 = vmatpush1.msra.mxu0 0.0
    %353 = vmatprep.subr.mxu0 0.0
    %354 = vmatpush1.msra.mxu0 0.0
    %355 = vmatprep.subr.mxu0 0.0
    %356 = vmatpush1.msra.mxu0 0.0
    %357 = vmatprep.subr.mxu0 0.0
    %358 = vmatpush1.msra.mxu0 0.0
    %359 = vmatprep.subr.mxu0 0.0
    %360 = vmatpush1.msra.mxu0 0.0
    %361 = vmatprep.subr.mxu0 0.0
    %362 = vmatpush1.msra.mxu0 0.0
    %363 = vmatprep.subr.mxu0 0.0
    %364 = vmatpush1.msra.mxu0 0.0
    %365 = vmatprep.subr.mxu0 0.0
    %366 = vmatpush1.msra.mxu0 0.0
    %367 = vmatprep.subr.mxu0 0.0
    %368 = vmatpush1.msra.mxu0 0.0
    %369 = vmatprep.subr.mxu0 0.0
    %370 = vmatpush1.msra.mxu0 0.0
    %371 = vmatprep.subr.mxu0 0.0
    %372 = vmatpush1.msra.mxu0 0.0
    %373 = vmatprep.subr.mxu0 0.0
    %374 = vmatpush1.msra.mxu0 0.0
    %375 = vmatprep.subr.mxu0 0.0
    %376 = vmatpush1.msra.mxu0 0.0
    %377 = vmatprep.subr.mxu0 0.0
    %378 = vmatpush1.msra.mxu0 0.0
    %379 = vmatprep.subr.mxu0 0.0
    %380 = vmatpush1.msra.mxu0 0.0
    %381 = vmatprep.subr.mxu0 0.0
    %382 = vmatpush1.msra.mxu0 0.0
    %383 = vmatprep.subr.mxu0 0.0
    %384 = vmatpush1.msra.mxu0 0.0
    %385 = vmatprep.subr.mxu0 0.0
    %386 = vmatpush1.msra.mxu0 0.0
    %387 = vmatprep.subr.mxu0 0.0
    %388 = vmatpush1.msra.mxu0 0.0
    %389 = vmatprep.subr.mxu0 0.0
    %390 = vmatpush1.msra.mxu0 0.0
    %391 = vmatprep.subr.mxu0 0.0
    %392 = vmatpush1.msra.mxu0 0.0
    %393 = vmatprep.subr.mxu0 0.0
    %394 = vmatpush1.msra.mxu0 0.0
    %395 = vmatprep.subr.mxu0 0.0
    %396 = vmatpush1.msra.mxu0 0.0
    %397 = vmatprep.subr.mxu0 0.0
    %398 = vmatpush1.msra.mxu0 0.0
    %399 = vmatprep.subr.mxu0 0.0
    %400 = vmatpush1.msra.mxu0 0.0
    %401 = vmatprep.subr.mxu0 0.0
    %402 = vmatpush1.msra.mxu0 0.0
    %403 = vmatprep.subr.mxu0 0.0
    %404 = vmatpush1.msra.mxu0 0.0
    %405 = vmatprep.mubr.f32.mxu0 0.0
    %406 = vmatmul.mubr.f32.gmra.mrb[0].mxu0 %v339
    %v407 = vpop.f32.mrb[0].mxu0
    %v408 = vadd.f32 0.0, %v407
    %v409 = vpop.f32.mrb[0].mxu0
    %410 = vdwg.mxu0
    %v412 = vsel %vm337, %v176, 0
    %414 = vmatprep.subr.mxu0 0.0
    %415 = vmatpush1.msra.mxu0 %v328
    %416 = vmatprep.subr.mxu0 0.0
    %417 = vmatpush1.msra.mxu0 %v329
    %418 = vmatprep.subr.mxu0 0.0
    %419 = vmatpush1.msra.mxu0 %v330
    %420 = vmatprep.subr.mxu0 0.0
    %421 = vmatpush1.msra.mxu0 0.0
    %422 = vmatprep.subr.mxu0 0.0
    %423 = vmatpush1.msra.mxu0 0.0
    %424 = vmatprep.subr.mxu0 0.0
    %425 = vmatpush1.msra.mxu0 0.0
    %426 = vmatprep.subr.mxu0 0.0
    %427 = vmatpush1.msra.mxu0 0.0
    %428 = vmatprep.subr.mxu0 0.0
    %429 = vmatpush1.msra.mxu0 0.0
    %430 = vmatprep.subr.mxu0 0.0
    %431 = vmatpush1.msra.mxu0 0.0
    %432 = vmatprep.subr.mxu0 0.0
    %433 = vmatpush1.msra.mxu0 0.0
    %434 = vmatprep.subr.mxu0 0.0
    %435 = vmatpush1.msra.mxu0 0.0
    %436 = vmatprep.subr.mxu0 0.0
    %437 = vmatpush1.msra.mxu0 0.0
    %438 = vmatprep.subr.mxu0 0.0
    %439 = vmatpush1.msra.mxu0 0.0
    %440 = vmatprep.subr.mxu0 0.0
    %441 = vmatpush1.msra.mxu0 0.0
    %442 = vmatprep.subr.mxu0 0.0
    %443 = vmatpush1.msra.mxu0 0.0
    %444 = vmatprep.subr.mxu0 0.0
    %445 = vmatpush1.msra.mxu0 0.0
    %446 = vmatprep.subr.mxu0 0.0
    %447 = vmatpush1.msra.mxu0 0.0
    %448 = vmatprep.subr.mxu0 0.0
    %449 = vmatpush1.msra.mxu0 0.0
    %450 = vmatprep.subr.mxu0 0.0
    %451 = vmatpush1.msra.mxu0 0.0
    %452 = vmatprep.subr.mxu0 0.0
    %453 = vmatpush1.msra.mxu0 0.0
    %454 = vmatprep.subr.mxu0 0.0
    %455 = vmatpush1.msra.mxu0 0.0
    %456 = vmatprep.subr.mxu0 0.0
    %457 = vmatpush1.msra.mxu0 0.0
    %458 = vmatprep.subr.mxu0 0.0
    %459 = vmatpush1.msra.mxu0 0.0
    %460 = vmatprep.subr.mxu0 0.0
    %461 = vmatpush1.msra.mxu0 0.0
    %462 = vmatprep.subr.mxu0 0.0
    %463 = vmatpush1.msra.mxu0 0.0
    %464 = vmatprep.subr.mxu0 0.0
    %465 = vmatpush1.msra.mxu0 0.0
    %466 = vmatprep.subr.mxu0 0.0
    %467 = vmatpush1.msra.mxu0 0.0
    %468 = vmatprep.subr.mxu0 0.0
    %469 = vmatpush1.msra.mxu0 0.0
    %470 = vmatprep.subr.mxu0 0.0
    %471 = vmatpush1.msra.mxu0 0.0
    %472 = vmatprep.subr.mxu0 0.0
    %473 = vmatpush1.msra.mxu0 0.0
    %474 = vmatprep.subr.mxu0 0.0
    %475 = vmatpush1.msra.mxu0 0.0
    %476 = vmatprep.subr.mxu0 0.0
    %477 = vmatpush1.msra.mxu0 0.0
    %478 = vmatprep.mubr.f32.mxu0 0.0
    %479 = vmatmul.mubr.f32.gmra.mrb[0].mxu0 %v412
    %v480 = vpop.f32.mrb[0].mxu0
    %v481 = vadd.f32 0.0, %v480
    %v482 = vpop.f32.mrb[0].mxu0
    %483 = vdwg.mxu0
    %v485 = vsel %vm337, %v249, 0
    %487 = vmatprep.subr.mxu0 0.0
    %488 = vmatpush1.msra.mxu0 %v331
    %489 = vmatprep.subr.mxu0 0.0
    %490 = vmatpush1.msra.mxu0 %v332
    %491 = vmatprep.subr.mxu0 0.0
    %492 = vmatpush1.msra.mxu0 %v333
    %493 = vmatprep.subr.mxu0 0.0
    %494 = vmatpush1.msra.mxu0 0.0
    %495 = vmatprep.subr.mxu0 0.0
    %496 = vmatpush1.msra.mxu0 0.0
    %497 = vmatprep.subr.mxu0 0.0
    %498 = vmatpush1.msra.mxu0 0.0
    %499 = vmatprep.subr.mxu0 0.0
    %500 = vmatpush1.msra.mxu0 0.0
    %501 = vmatprep.subr.mxu0 0.0
    %502 = vmatpush1.msra.mxu0 0.0
    %503 = vmatprep.subr.mxu0 0.0
    %504 = vmatpush1.msra.mxu0 0.0
    %505 = vmatprep.subr.mxu0 0.0
    %506 = vmatpush1.msra.mxu0 0.0
    %507 = vmatprep.subr.mxu0 0.0
    %508 = vmatpush1.msra.mxu0 0.0
    %509 = vmatprep.subr.mxu0 0.0
    %510 = vmatpush1.msra.mxu0 0.0
    %511 = vmatprep.subr.mxu0 0.0
    %512 = vmatpush1.msra.mxu0 0.0
    %513 = vmatprep.subr.mxu0 0.0
    %514 = vmatpush1.msra.mxu0 0.0
    %515 = vmatprep.subr.mxu0 0.0
    %516 = vmatpush1.msra.mxu0 0.0
    %517 = vmatprep.subr.mxu0 0.0
    %518 = vmatpush1.msra.mxu0 0.0
    %519 = vmatprep.subr.mxu0 0.0
    %520 = vmatpush1.msra.mxu0 0.0
    %521 = vmatprep.subr.mxu0 0.0
    %522 = vmatpush1.msra.mxu0 0.0
    %523 = vmatprep.subr.mxu0 0.0
    %524 = vmatpush1.msra.mxu0 0.0
    %525 = vmatprep.subr.mxu0 0.0
    %526 = vmatpush1.msra.mxu0 0.0
    %527 = vmatprep.subr.mxu0 0.0
    %528 = vmatpush1.msra.mxu0 0.0
    %529 = vmatprep.subr.mxu0 0.0
    %530 = vmatpush1.msra.mxu0 0.0
    %531 = vmatprep.subr.mxu0 0.0
    %532 = vmatpush1.msra.mxu0 0.0
    %533 = vmatprep.subr.mxu0 0.0
    %534 = vmatpush1.msra.mxu0 0.0
    %535 = vmatprep.subr.mxu0 0.0
    %536 = vmatpush1.msra.mxu0 0.0
    %537 = vmatprep.subr.mxu0 0.0
    %538 = vmatpush1.msra.mxu0 0.0
    %539 = vmatprep.subr.mxu0 0.0
    %540 = vmatpush1.msra.mxu0 0.0
    %541 = vmatprep.subr.mxu0 0.0
    %542 = vmatpush1.msra.mxu0 0.0
    %543 = vmatprep.subr.mxu0 0.0
    %544 = vmatpush1.msra.mxu0 0.0
    %545 = vmatprep.subr.mxu0 0.0
    %546 = vmatpush1.msra.mxu0 0.0
    %547 = vmatprep.subr.mxu0 0.0
    %548 = vmatpush1.msra.mxu0 0.0
    %549 = vmatprep.subr.mxu0 0.0
    %550 = vmatpush1.msra.mxu0 0.0
    %551 = vmatprep.mubr.f32.mxu0 0.0
    %552 = vmatmul.mubr.f32.gmra.mrb[0].mxu0 %v485
    %v553 = vpop.f32.mrb[0].mxu0
    %v554 = vadd.f32 0.0, %v553
    %v555 = vpop.f32.mrb[0].mxu0
    %556 = vdwg.mxu0
    %v558 = vsel %vm337, %v322, 0
    %560 = vmatprep.subr.mxu0 0.0
    %561 = vmatpush1.msra.mxu0 %v334
    %562 = vmatprep.subr.mxu0 0.0
    %563 = vmatpush1.msra.mxu0 %v335
    %564 = vmatprep.subr.mxu0 0.0
    %565 = vmatpush1.msra.mxu0 %v336
    %566 = vmatprep.subr.mxu0 0.0
    %567 = vmatpush1.msra.mxu0 0.0
    %568 = vmatprep.subr.mxu0 0.0
    %569 = vmatpush1.msra.mxu0 0.0
    %570 = vmatprep.subr.mxu0 0.0
    %571 = vmatpush1.msra.mxu0 0.0
    %572 = vmatprep.subr.mxu0 0.0
    %573 = vmatpush1.msra.mxu0 0.0
    %574 = vmatprep.subr.mxu0 0.0
    %575 = vmatpush1.msra.mxu0 0.0
    %576 = vmatprep.subr.mxu0 0.0
    %577 = vmatpush1.msra.mxu0 0.0
    %578 = vmatprep.subr.mxu0 0.0
    %579 = vmatpush1.msra.mxu0 0.0
    %580 = vmatprep.subr.mxu0 0.0
    %581 = vmatpush1.msra.mxu0 0.0
    %582 = vmatprep.subr.mxu0 0.0
    %583 = vmatpush1.msra.mxu0 0.0
    %584 = vmatprep.subr.mxu0 0.0
    %585 = vmatpush1.msra.mxu0 0.0
    %586 = vmatprep.subr.mxu0 0.0
    %587 = vmatpush1.msra.mxu0 0.0
    %588 = vmatprep.subr.mxu0 0.0
    %589 = vmatpush1.msra.mxu0 0.0
    %590 = vmatprep.subr.mxu0 0.0
    %591 = vmatpush1.msra.mxu0 0.0
    %592 = vmatprep.subr.mxu0 0.0
    %593 = vmatpush1.msra.mxu0 0.0
    %594 = vmatprep.subr.mxu0 0.0
    %595 = vmatpush1.msra.mxu0 0.0
    %596 = vmatprep.subr.mxu0 0.0
    %597 = vmatpush1.msra.mxu0 0.0
    %598 = vmatprep.subr.mxu0 0.0
    %599 = vmatpush1.msra.mxu0 0.0
    %600 = vmatprep.subr.mxu0 0.0
    %601 = vmatpush1.msra.mxu0 0.0
    %602 = vmatprep.subr.mxu0 0.0
    %603 = vmatpush1.msra.mxu0 0.0
    %604 = vmatprep.subr.mxu0 0.0
    %605 = vmatpush1.msra.mxu0 0.0
    %606 = vmatprep.subr.mxu0 0.0
    %607 = vmatpush1.msra.mxu0 0.0
    %608 = vmatprep.subr.mxu0 0.0
    %609 = vmatpush1.msra.mxu0 0.0
    %610 = vmatprep.subr.mxu0 0.0
    %611 = vmatpush1.msra.mxu0 0.0
    %612 = vmatprep.subr.mxu0 0.0
    %613 = vmatpush1.msra.mxu0 0.0
    %614 = vmatprep.subr.mxu0 0.0
    %615 = vmatpush1.msra.mxu0 0.0
    %616 = vmatprep.subr.mxu0 0.0
    %617 = vmatpush1.msra.mxu0 0.0
    %618 = vmatprep.subr.mxu0 0.0
    %619 = vmatpush1.msra.mxu0 0.0
    %620 = vmatprep.subr.mxu0 0.0
    %621 = vmatpush1.msra.mxu0 0.0
    %622 = vmatprep.subr.mxu0 0.0
    %623 = vmatpush1.msra.mxu0 0.0
    %624 = vmatprep.mubr.f32.mxu0 0.0
    %625 = vmatmul.mubr.f32.gmra.mrb[0].mxu0 %v558
    %v626 = vpop.f32.mrb[0].mxu0
    %v627 = vadd.f32 0.0, %v626
    %v628 = vpop.f32.mrb[0].mxu0
    %629 = vdwg.mxu0
    %v630 = vadd.f32 %v408, %v481
    %v631 = vadd.f32 %v630, %v554
    %v632 = vadd.f32 %v631, %v627
    %v633 = vld [vmem:[%s4] sm:$0x1]
    %v635 = vlaneseq
    %v636 = vshrl.u32 %v635, 7
    %v637 = vsub.s32 0, %v636
    %v638 = vrot.slane %v633, %v637
    %v640 = vadd.f32 %v632, %v638
    %v641 = vmax.f32 %v640, 0.0
    %642 = vmatprep.subr.mxu0 0.0
    %643 = vmatpush1.msra.mxu0 %v641
    %644 = vmatprep.subr.mxu0 0.0
    %645 = vmatpush1.msra.mxu0 0.0
    %646 = vmatprep.subr.mxu0 0.0
    %647 = vmatpush1.msra.mxu0 0.0
    %648 = vmatprep.subr.mxu0 0.0
    %649 = vmatpush1.msra.mxu0 0.0
    %650 = vmatprep.subr.mxu0 0.0
    %651 = vmatpush1.msra.mxu0 0.0
    %652 = vmatprep.subr.mxu0 0.0
    %653 = vmatpush1.msra.mxu0 0.0
    %654 = vmatprep.subr.mxu0 0.0
    %655 = vmatpush1.msra.mxu0 0.0
    %656 = vmatprep.subr.mxu0 0.0
    %657 = vmatpush1.msra.mxu0 0.0
    %658 = vmatprep.subr.mxu0 0.0
    %659 = vmatpush1.msra.mxu0 0.0
    %660 = vmatprep.subr.mxu0 0.0
    %661 = vmatpush1.msra.mxu0 0.0
    %662 = vmatprep.subr.mxu0 0.0
    %663 = vmatpush1.msra.mxu0 0.0
    %664 = vmatprep.subr.mxu0 0.0
    %665 = vmatpush1.msra.mxu0 0.0
    %666 = vmatprep.subr.mxu0 0.0
    %667 = vmatpush1.msra.mxu0 0.0
    %668 = vmatprep.subr.mxu0 0.0
    %669 = vmatpush1.msra.mxu0 0.0
    %670 = vmatprep.subr.mxu0 0.0
    %671 = vmatpush1.msra.mxu0 0.0
    %672 = vmatprep.subr.mxu0 0.0
    %673 = vmatpush1.msra.mxu0 0.0
    %674 = vmatprep.subr.mxu0 0.0
    %675 = vmatpush1.msra.mxu0 0.0
    %676 = vmatprep.subr.mxu0 0.0
    %677 = vmatpush1.msra.mxu0 0.0
    %678 = vmatprep.subr.mxu0 0.0
    %679 = vmatpush1.msra.mxu0 0.0
    %680 = vmatprep.subr.mxu0 0.0
    %681 = vmatpush1.msra.mxu0 0.0
    %682 = vmatprep.subr.mxu0 0.0
    %683 = vmatpush1.msra.mxu0 0.0
    %684 = vmatprep.subr.mxu0 0.0
    %685 = vmatpush1.msra.mxu0 0.0
    %686 = vmatprep.subr.mxu0 0.0
    %687 = vmatpush1.msra.mxu0 0.0
    %688 = vmatprep.subr.mxu0 0.0
    %689 = vmatpush1.msra.mxu0 0.0
    %690 = vmatprep.subr.mxu0 0.0
    %691 = vmatpush1.msra.mxu0 0.0
    %692 = vmatprep.subr.mxu0 0.0
    %693 = vmatpush1.msra.mxu0 0.0
    %694 = vmatprep.subr.mxu0 0.0
    %695 = vmatpush1.msra.mxu0 0.0
    %696 = vmatprep.subr.mxu0 0.0
    %697 = vmatpush1.msra.mxu0 0.0
    %698 = vmatprep.subr.mxu0 0.0
    %699 = vmatpush1.msra.mxu0 0.0
    %700 = vmatprep.subr.mxu0 0.0
    %701 = vmatpush1.msra.mxu0 0.0
    %702 = vmatprep.subr.mxu0 0.0
    %703 = vmatpush1.msra.mxu0 0.0
    %704 = vmatprep.subr.mxu0 0.0
    %705 = vmatpush1.msra.mxu0 0.0
    %706 = vmatprep.mubr.f32.mxu0 0.0
    %707 = vmatmul.mubr.f32.gmra.mrb[0].mxu0 %v34
    %v708 = vpop.f32.mrb[0].mxu0
    %v709 = vadd.f32 0.0, %v708
    %v710 = vpop.f32.mrb[0].mxu0
    %711 = vdwg.mxu0
    %712 = vmatprep.subr.mxu0 0.0
    %713 = vmatpush1.msra.mxu0 %v641
    %714 = vmatprep.subr.mxu0 0.0
    %715 = vmatpush1.msra.mxu0 0.0
    %716 = vmatprep.subr.mxu0 0.0
    %717 = vmatpush1.msra.mxu0 0.0
    %718 = vmatprep.subr.mxu0 0.0
    %719 = vmatpush1.msra.mxu0 0.0
    %720 = vmatprep.subr.mxu0 0.0
    %721 = vmatpush1.msra.mxu0 0.0
    %722 = vmatprep.subr.mxu0 0.0
    %723 = vmatpush1.msra.mxu0 0.0
    %724 = vmatprep.subr.mxu0 0.0
    %725 = vmatpush1.msra.mxu0 0.0
    %726 = vmatprep.subr.mxu0 0.0
    %727 = vmatpush1.msra.mxu0 0.0
    %728 = vmatprep.subr.mxu0 0.0
    %729 = vmatpush1.msra.mxu0 0.0
    %730 = vmatprep.subr.mxu0 0.0
    %731 = vmatpush1.msra.mxu0 0.0
    %732 = vmatprep.subr.mxu0 0.0
    %733 = vmatpush1.msra.mxu0 0.0
    %734 = vmatprep.subr.mxu0 0.0
    %735 = vmatpush1.msra.mxu0 0.0
    %736 = vmatprep.subr.mxu0 0.0
    %737 = vmatpush1.msra.mxu0 0.0
    %738 = vmatprep.subr.mxu0 0.0
    %739 = vmatpush1.msra.mxu0 0.0
    %740 = vmatprep.subr.mxu0 0.0
    %741 = vmatpush1.msra.mxu0 0.0
    %742 = vmatprep.subr.mxu0 0.0
    %743 = vmatpush1.msra.mxu0 0.0
    %744 = vmatprep.subr.mxu0 0.0
    %745 = vmatpush1.msra.mxu0 0.0
    %746 = vmatprep.subr.mxu0 0.0
    %747 = vmatpush1.msra.mxu0 0.0
    %748 = vmatprep.subr.mxu0 0.0
    %749 = vmatpush1.msra.mxu0 0.0
    %750 = vmatprep.subr.mxu0 0.0
    %751 = vmatpush1.msra.mxu0 0.0
    %752 = vmatprep.subr.mxu0 0.0
    %753 = vmatpush1.msra.mxu0 0.0
    %754 = vmatprep.subr.mxu0 0.0
    %755 = vmatpush1.msra.mxu0 0.0
    %756 = vmatprep.subr.mxu0 0.0
    %757 = vmatpush1.msra.mxu0 0.0
    %758 = vmatprep.subr.mxu0 0.0
    %759 = vmatpush1.msra.mxu0 0.0
    %760 = vmatprep.subr.mxu0 0.0
    %761 = vmatpush1.msra.mxu0 0.0
    %762 = vmatprep.subr.mxu0 0.0
    %763 = vmatpush1.msra.mxu0 0.0
    %764 = vmatprep.subr.mxu0 0.0
    %765 = vmatpush1.msra.mxu0 0.0
    %766 = vmatprep.subr.mxu0 0.0
    %767 = vmatpush1.msra.mxu0 0.0
    %768 = vmatprep.subr.mxu0 0.0
    %769 = vmatpush1.msra.mxu0 0.0
    %770 = vmatprep.subr.mxu0 0.0
    %771 = vmatpush1.msra.mxu0 0.0
    %772 = vmatprep.subr.mxu0 0.0
    %773 = vmatpush1.msra.mxu0 0.0
    %774 = vmatprep.subr.mxu0 0.0
    %775 = vmatpush1.msra.mxu0 0.0
    %776 = vmatprep.mubr.f32.mxu0 0.0
    %777 = vmatmul.mubr.f32.gmra.mrb[0].mxu0 %v107
    %v778 = vpop.f32.mrb[0].mxu0
    %v779 = vadd.f32 0.0, %v778
    %v780 = vpop.f32.mrb[0].mxu0
    %781 = vdwg.mxu0
    %782 = vmatprep.subr.mxu0 0.0
    %783 = vmatpush1.msra.mxu0 %v641
    %784 = vmatprep.subr.mxu0 0.0
    %785 = vmatpush1.msra.mxu0 0.0
    %786 = vmatprep.subr.mxu0 0.0
    %787 = vmatpush1.msra.mxu0 0.0
    %788 = vmatprep.subr.mxu0 0.0
    %789 = vmatpush1.msra.mxu0 0.0
    %790 = vmatprep.subr.mxu0 0.0
    %791 = vmatpush1.msra.mxu0 0.0
    %792 = vmatprep.subr.mxu0 0.0
    %793 = vmatpush1.msra.mxu0 0.0
    %794 = vmatprep.subr.mxu0 0.0
    %795 = vmatpush1.msra.mxu0 0.0
    %796 = vmatprep.subr.mxu0 0.0
    %797 = vmatpush1.msra.mxu0 0.0
    %798 = vmatprep.subr.mxu0 0.0
    %799 = vmatpush1.msra.mxu0 0.0
    %800 = vmatprep.subr.mxu0 0.0
    %801 = vmatpush1.msra.mxu0 0.0
    %802 = vmatprep.subr.mxu0 0.0
    %803 = vmatpush1.msra.mxu0 0.0
    %804 = vmatprep.subr.mxu0 0.0
    %805 = vmatpush1.msra.mxu0 0.0
    %806 = vmatprep.subr.mxu0 0.0
    %807 = vmatpush1.msra.mxu0 0.0
    %808 = vmatprep.subr.mxu0 0.0
    %809 = vmatpush1.msra.mxu0 0.0
    %810 = vmatprep.subr.mxu0 0.0
    %811 = vmatpush1.msra.mxu0 0.0
    %812 = vmatprep.subr.mxu0 0.0
    %813 = vmatpush1.msra.mxu0 0.0
    %814 = vmatprep.subr.mxu0 0.0
    %815 = vmatpush1.msra.mxu0 0.0
    %816 = vmatprep.subr.mxu0 0.0
    %817 = vmatpush1.msra.mxu0 0.0
    %818 = vmatprep.subr.mxu0 0.0
    %819 = vmatpush1.msra.mxu0 0.0
    %820 = vmatprep.subr.mxu0 0.0
    %821 = vmatpush1.msra.mxu0 0.0
    %822 = vmatprep.subr.mxu0 0.0
    %823 = vmatpush1.msra.mxu0 0.0
    %824 = vmatprep.subr.mxu0 0.0
    %825 = vmatpush1.msra.mxu0 0.0
    %826 = vmatprep.subr.mxu0 0.0
    %827 = vmatpush1.msra.mxu0 0.0
    %828 = vmatprep.subr.mxu0 0.0
    %829 = vmatpush1.msra.mxu0 0.0
    %830 = vmatprep.subr.mxu0 0.0
    %831 = vmatpush1.msra.mxu0 0.0
    %832 = vmatprep.subr.mxu0 0.0
    %833 = vmatpush1.msra.mxu0 0.0
    %834 = vmatprep.subr.mxu0 0.0
    %835 = vmatpush1.msra.mxu0 0.0
    %836 = vmatprep.subr.mxu0 0.0
    %837 = vmatpush1.msra.mxu0 0.0
    %838 = vmatprep.subr.mxu0 0.0
    %839 = vmatpush1.msra.mxu0 0.0
    %840 = vmatprep.subr.mxu0 0.0
    %841 = vmatpush1.msra.mxu0 0.0
    %842 = vmatprep.subr.mxu0 0.0
    %843 = vmatpush1.msra.mxu0 0.0
    %844 = vmatprep.subr.mxu0 0.0
    %845 = vmatpush1.msra.mxu0 0.0
    %846 = vmatprep.mubr.f32.mxu0 0.0
    %847 = vmatmul.mubr.f32.gmra.mrb[0].mxu0 %v180
    %v848 = vpop.f32.mrb[0].mxu0
    %v849 = vadd.f32 0.0, %v848
    %v850 = vpop.f32.mrb[0].mxu0
    %851 = vdwg.mxu0
    %852 = vmatprep.subr.mxu0 0.0
    %853 = vmatpush1.msra.mxu0 %v641
    %854 = vmatprep.subr.mxu0 0.0
    %855 = vmatpush1.msra.mxu0 0.0
    %856 = vmatprep.subr.mxu0 0.0
    %857 = vmatpush1.msra.mxu0 0.0
    %858 = vmatprep.subr.mxu0 0.0
    %859 = vmatpush1.msra.mxu0 0.0
    %860 = vmatprep.subr.mxu0 0.0
    %861 = vmatpush1.msra.mxu0 0.0
    %862 = vmatprep.subr.mxu0 0.0
    %863 = vmatpush1.msra.mxu0 0.0
    %864 = vmatprep.subr.mxu0 0.0
    %865 = vmatpush1.msra.mxu0 0.0
    %866 = vmatprep.subr.mxu0 0.0
    %867 = vmatpush1.msra.mxu0 0.0
    %868 = vmatprep.subr.mxu0 0.0
    %869 = vmatpush1.msra.mxu0 0.0
    %870 = vmatprep.subr.mxu0 0.0
    %871 = vmatpush1.msra.mxu0 0.0
    %872 = vmatprep.subr.mxu0 0.0
    %873 = vmatpush1.msra.mxu0 0.0
    %874 = vmatprep.subr.mxu0 0.0
    %875 = vmatpush1.msra.mxu0 0.0
    %876 = vmatprep.subr.mxu0 0.0
    %877 = vmatpush1.msra.mxu0 0.0
    %878 = vmatprep.subr.mxu0 0.0
    %879 = vmatpush1.msra.mxu0 0.0
    %880 = vmatprep.subr.mxu0 0.0
    %881 = vmatpush1.msra.mxu0 0.0
    %882 = vmatprep.subr.mxu0 0.0
    %883 = vmatpush1.msra.mxu0 0.0
    %884 = vmatprep.subr.mxu0 0.0
    %885 = vmatpush1.msra.mxu0 0.0
    %886 = vmatprep.subr.mxu0 0.0
    %887 = vmatpush1.msra.mxu0 0.0
    %888 = vmatprep.subr.mxu0 0.0
    %889 = vmatpush1.msra.mxu0 0.0
    %890 = vmatprep.subr.mxu0 0.0
    %891 = vmatpush1.msra.mxu0 0.0
    %892 = vmatprep.subr.mxu0 0.0
    %893 = vmatpush1.msra.mxu0 0.0
    %894 = vmatprep.subr.mxu0 0.0
    %895 = vmatpush1.msra.mxu0 0.0
    %896 = vmatprep.subr.mxu0 0.0
    %897 = vmatpush1.msra.mxu0 0.0
    %898 = vmatprep.subr.mxu0 0.0
    %899 = vmatpush1.msra.mxu0 0.0
    %900 = vmatprep.subr.mxu0 0.0
    %901 = vmatpush1.msra.mxu0 0.0
    %902 = vmatprep.subr.mxu0 0.0
    %903 = vmatpush1.msra.mxu0 0.0
    %904 = vmatprep.subr.mxu0 0.0
    %905 = vmatpush1.msra.mxu0 0.0
    %906 = vmatprep.subr.mxu0 0.0
    %907 = vmatpush1.msra.mxu0 0.0
    %908 = vmatprep.subr.mxu0 0.0
    %909 = vmatpush1.msra.mxu0 0.0
    %910 = vmatprep.subr.mxu0 0.0
    %911 = vmatpush1.msra.mxu0 0.0
    %912 = vmatprep.subr.mxu0 0.0
    %913 = vmatpush1.msra.mxu0 0.0
    %914 = vmatprep.subr.mxu0 0.0
    %915 = vmatpush1.msra.mxu0 0.0
    %916 = vmatprep.mubr.f32.mxu0 0.0
    %917 = vmatmul.mubr.f32.gmra.mrb[0].mxu0 %v253
    %v918 = vpop.f32.mrb[0].mxu0
    %v919 = vadd.f32 0.0, %v918
    %v920 = vpop.f32.mrb[0].mxu0
    %921 = vdwg.mxu0
    %v922 = vld [vmem:[%s5] sm:$0xff]
    %v923 = vld [vmem:[%s5 + $0x8] sm:$0xf]
    %v924 = vld [vmem:[%s5 + $0x10] sm:$0xff]
    %v925 = vld [vmem:[%s5 + $0x18] sm:$0xf]
    %v926 = vld [vmem:[%s5 + $0x20] sm:$0xff]
    %v927 = vld [vmem:[%s5 + $0x28] sm:$0xf]
    %v928 = vld [vmem:[%s5 + $0x30] sm:$0xff]
    %v929 = vld [vmem:[%s5 + $0x38] sm:$0xf]
    %vm930 = vcmask 97280
    %v932 = vsel %vm930, %v709, 0
    %vm934 = vcmask 1043456
    %v936 = vsel %vm934, %v923, 0
    %938 = vmatprep.subr.mxu0 0.0
    %939 = vmatpush1.msra.mxu0 %v922
    %940 = vmatprep.subr.mxu0 0.0
    %941 = vmatpush1.msra.mxu0 %v936
    %942 = vmatprep.subr.mxu0 0.0
    %943 = vmatpush1.msra.mxu0 0.0
    %944 = vmatprep.subr.mxu0 0.0
    %945 = vmatpush1.msra.mxu0 0.0
    %946 = vmatprep.subr.mxu0 0.0
    %947 = vmatpush1.msra.mxu0 0.0
    %948 = vmatprep.subr.mxu0 0.0
    %949 = vmatpush1.msra.mxu0 0.0
    %950 = vmatprep.subr.mxu0 0.0
    %951 = vmatpush1.msra.mxu0 0.0
    %952 = vmatprep.subr.mxu0 0.0
    %953 = vmatpush1.msra.mxu0 0.0
    %954 = vmatprep.subr.mxu0 0.0
    %955 = vmatpush1.msra.mxu0 0.0
    %956 = vmatprep.subr.mxu0 0.0
    %957 = vmatpush1.msra.mxu0 0.0
    %958 = vmatprep.subr.mxu0 0.0
    %959 = vmatpush1.msra.mxu0 0.0
    %960 = vmatprep.subr.mxu0 0.0
    %961 = vmatpush1.msra.mxu0 0.0
    %962 = vmatprep.subr.mxu0 0.0
    %963 = vmatpush1.msra.mxu0 0.0
    %964 = vmatprep.subr.mxu0 0.0
    %965 = vmatpush1.msra.mxu0 0.0
    %966 = vmatprep.subr.mxu0 0.0
    %967 = vmatpush1.msra.mxu0 0.0
    %968 = vmatprep.subr.mxu0 0.0
    %969 = vmatpush1.msra.mxu0 0.0
    %970 = vmatprep.subr.mxu0 0.0
    %971 = vmatpush1.msra.mxu0 0.0
    %972 = vmatprep.subr.mxu0 0.0
    %973 = vmatpush1.msra.mxu0 0.0
    %974 = vmatprep.subr.mxu0 0.0
    %975 = vmatpush1.msra.mxu0 0.0
    %976 = vmatprep.subr.mxu0 0.0
    %977 = vmatpush1.msra.mxu0 0.0
    %978 = vmatprep.subr.mxu0 0.0
    %979 = vmatpush1.msra.mxu0 0.0
    %980 = vmatprep.subr.mxu0 0.0
    %981 = vmatpush1.msra.mxu0 0.0
    %982 = vmatprep.subr.mxu0 0.0
    %983 = vmatpush1.msra.mxu0 0.0
    %984 = vmatprep.subr.mxu0 0.0
    %985 = vmatpush1.msra.mxu0 0.0
    %986 = vmatprep.subr.mxu0 0.0
    %987 = vmatpush1.msra.mxu0 0.0
    %988 = vmatprep.subr.mxu0 0.0
    %989 = vmatpush1.msra.mxu0 0.0
    %990 = vmatprep.subr.mxu0 0.0
    %991 = vmatpush1.msra.mxu0 0.0
    %992 = vmatprep.subr.mxu0 0.0
    %993 = vmatpush1.msra.mxu0 0.0
    %994 = vmatprep.subr.mxu0 0.0
    %995 = vmatpush1.msra.mxu0 0.0
    %996 = vmatprep.subr.mxu0 0.0
    %997 = vmatpush1.msra.mxu0 0.0
    %998 = vmatprep.subr.mxu0 0.0
    %999 = vmatpush1.msra.mxu0 0.0
    %1000 = vmatprep.subr.mxu0 0.0
    %1001 = vmatpush1.msra.mxu0 0.0
    %1002 = vmatprep.mubr.f32.mxu0 0.0
    %1003 = vmatmul.mubr.f32.gmra.mrb[0].mxu0 %v932
    %v1004 = vpop.f32.mrb[0].mxu0
    %v1005 = vadd.f32 0.0, %v1004
    %v1006 = vpop.f32.mrb[0].mxu0
    %1007 = vdwg.mxu0
    %v1009 = vsel %vm930, %v779, 0
    %v1012 = vsel %vm934, %v925, 0
    %1014 = vmatprep.subr.mxu0 0.0
    %1015 = vmatpush1.msra.mxu0 %v924
    %1016 = vmatprep.subr.mxu0 0.0
    %1017 = vmatpush1.msra.mxu0 %v1012
    %1018 = vmatprep.subr.mxu0 0.0
    %1019 = vmatpush1.msra.mxu0 0.0
    %1020 = vmatprep.subr.mxu0 0.0
    %1021 = vmatpush1.msra.mxu0 0.0
    %1022 = vmatprep.subr.mxu0 0.0
    %1023 = vmatpush1.msra.mxu0 0.0
    %1024 = vmatprep.subr.mxu0 0.0
    %1025 = vmatpush1.msra.mxu0 0.0
    %1026 = vmatprep.subr.mxu0 0.0
    %1027 = vmatpush1.msra.mxu0 0.0
    %1028 = vmatprep.subr.mxu0 0.0
    %1029 = vmatpush1.msra.mxu0 0.0
    %1030 = vmatprep.subr.mxu0 0.0
    %1031 = vmatpush1.msra.mxu0 0.0
    %1032 = vmatprep.subr.mxu0 0.0
    %1033 = vmatpush1.msra.mxu0 0.0
    %1034 = vmatprep.subr.mxu0 0.0
    %1035 = vmatpush1.msra.mxu0 0.0
    %1036 = vmatprep.subr.mxu0 0.0
    %1037 = vmatpush1.msra.mxu0 0.0
    %1038 = vmatprep.subr.mxu0 0.0
    %1039 = vmatpush1.msra.mxu0 0.0
    %1040 = vmatprep.subr.mxu0 0.0
    %1041 = vmatpush1.msra.mxu0 0.0
    %1042 = vmatprep.subr.mxu0 0.0
    %1043 = vmatpush1.msra.mxu0 0.0
    %1044 = vmatprep.subr.mxu0 0.0
    %1045 = vmatpush1.msra.mxu0 0.0
    %1046 = vmatprep.subr.mxu0 0.0
    %1047 = vmatpush1.msra.mxu0 0.0
    %1048 = vmatprep.subr.mxu0 0.0
    %1049 = vmatpush1.msra.mxu0 0.0
    %1050 = vmatprep.subr.mxu0 0.0
    %1051 = vmatpush1.msra.mxu0 0.0
    %1052 = vmatprep.subr.mxu0 0.0
    %1053 = vmatpush1.msra.mxu0 0.0
    %1054 = vmatprep.subr.mxu0 0.0
    %1055 = vmatpush1.msra.mxu0 0.0
    %1056 = vmatprep.subr.mxu0 0.0
    %1057 = vmatpush1.msra.mxu0 0.0
    %1058 = vmatprep.subr.mxu0 0.0
    %1059 = vmatpush1.msra.mxu0 0.0
    %1060 = vmatprep.subr.mxu0 0.0
    %1061 = vmatpush1.msra.mxu0 0.0
    %1062 = vmatprep.subr.mxu0 0.0
    %1063 = vmatpush1.msra.mxu0 0.0
    %1064 = vmatprep.subr.mxu0 0.0
    %1065 = vmatpush1.msra.mxu0 0.0
    %1066 = vmatprep.subr.mxu0 0.0
    %1067 = vmatpush1.msra.mxu0 0.0
    %1068 = vmatprep.subr.mxu0 0.0
    %1069 = vmatpush1.msra.mxu0 0.0
    %1070 = vmatprep.subr.mxu0 0.0
    %1071 = vmatpush1.msra.mxu0 0.0
    %1072 = vmatprep.subr.mxu0 0.0
    %1073 = vmatpush1.msra.mxu0 0.0
    %1074 = vmatprep.subr.mxu0 0.0
    %1075 = vmatpush1.msra.mxu0 0.0
    %1076 = vmatprep.subr.mxu0 0.0
    %1077 = vmatpush1.msra.mxu0 0.0
    %1078 = vmatprep.mubr.f32.mxu0 0.0
    %1079 = vmatmul.mubr.f32.gmra.mrb[0].mxu0 %v1009
    %v1080 = vpop.f32.mrb[0].mxu0
    %v1081 = vadd.f32 0.0, %v1080
    %v1082 = vpop.f32.mrb[0].mxu0
    %1083 = vdwg.mxu0
    %v1085 = vsel %vm930, %v849, 0
    %v1088 = vsel %vm934, %v927, 0
    %1090 = vmatprep.subr.mxu0 0.0
    %1091 = vmatpush1.msra.mxu0 %v926
    %1092 = vmatprep.subr.mxu0 0.0
    %1093 = vmatpush1.msra.mxu0 %v1088
    %1094 = vmatprep.subr.mxu0 0.0
    %1095 = vmatpush1.msra.mxu0 0.0
    %1096 = vmatprep.subr.mxu0 0.0
    %1097 = vmatpush1.msra.mxu0 0.0
    %1098 = vmatprep.subr.mxu0 0.0
    %1099 = vmatpush1.msra.mxu0 0.0
    %1100 = vmatprep.subr.mxu0 0.0
    %1101 = vmatpush1.msra.mxu0 0.0
    %1102 = vmatprep.subr.mxu0 0.0
    %1103 = vmatpush1.msra.mxu0 0.0
    %1104 = vmatprep.subr.mxu0 0.0
    %1105 = vmatpush1.msra.mxu0 0.0
    %1106 = vmatprep.subr.mxu0 0.0
    %1107 = vmatpush1.msra.mxu0 0.0
    %1108 = vmatprep.subr.mxu0 0.0
    %1109 = vmatpush1.msra.mxu0 0.0
    %1110 = vmatprep.subr.mxu0 0.0
    %1111 = vmatpush1.msra.mxu0 0.0
    %1112 = vmatprep.subr.mxu0 0.0
    %1113 = vmatpush1.msra.mxu0 0.0
    %1114 = vmatprep.subr.mxu0 0.0
    %1115 = vmatpush1.msra.mxu0 0.0
    %1116 = vmatprep.subr.mxu0 0.0
    %1117 = vmatpush1.msra.mxu0 0.0
    %1118 = vmatprep.subr.mxu0 0.0
    %1119 = vmatpush1.msra.mxu0 0.0
    %1120 = vmatprep.subr.mxu0 0.0
    %1121 = vmatpush1.msra.mxu0 0.0
    %1122 = vmatprep.subr.mxu0 0.0
    %1123 = vmatpush1.msra.mxu0 0.0
    %1124 = vmatprep.subr.mxu0 0.0
    %1125 = vmatpush1.msra.mxu0 0.0
    %1126 = vmatprep.subr.mxu0 0.0
    %1127 = vmatpush1.msra.mxu0 0.0
    %1128 = vmatprep.subr.mxu0 0.0
    %1129 = vmatpush1.msra.mxu0 0.0
    %1130 = vmatprep.subr.mxu0 0.0
    %1131 = vmatpush1.msra.mxu0 0.0
    %1132 = vmatprep.subr.mxu0 0.0
    %1133 = vmatpush1.msra.mxu0 0.0
    %1134 = vmatprep.subr.mxu0 0.0
    %1135 = vmatpush1.msra.mxu0 0.0
    %1136 = vmatprep.subr.mxu0 0.0
    %1137 = vmatpush1.msra.mxu0 0.0
    %1138 = vmatprep.subr.mxu0 0.0
    %1139 = vmatpush1.msra.mxu0 0.0
    %1140 = vmatprep.subr.mxu0 0.0
    %1141 = vmatpush1.msra.mxu0 0.0
    %1142 = vmatprep.subr.mxu0 0.0
    %1143 = vmatpush1.msra.mxu0 0.0
    %1144 = vmatprep.subr.mxu0 0.0
    %1145 = vmatpush1.msra.mxu0 0.0
    %1146 = vmatprep.subr.mxu0 0.0
    %1147 = vmatpush1.msra.mxu0 0.0
    %1148 = vmatprep.subr.mxu0 0.0
    %1149 = vmatpush1.msra.mxu0 0.0
    %1150 = vmatprep.subr.mxu0 0.0
    %1151 = vmatpush1.msra.mxu0 0.0
    %1152 = vmatprep.subr.mxu0 0.0
    %1153 = vmatpush1.msra.mxu0 0.0
    %1154 = vmatprep.mubr.f32.mxu0 0.0
    %1155 = vmatmul.mubr.f32.gmra.mrb[0].mxu0 %v1085
    %v1156 = vpop.f32.mrb[0].mxu0
    %v1157 = vadd.f32 0.0, %v1156
    %v1158 = vpop.f32.mrb[0].mxu0
    %1159 = vdwg.mxu0
    %v1161 = vsel %vm930, %v919, 0
    %v1164 = vsel %vm934, %v929, 0
    %1166 = vmatprep.subr.mxu0 0.0
    %1167 = vmatpush1.msra.mxu0 %v928
    %1168 = vmatprep.subr.mxu0 0.0
    %1169 = vmatpush1.msra.mxu0 %v1164
    %1170 = vmatprep.subr.mxu0 0.0
    %1171 = vmatpush1.msra.mxu0 0.0
    %1172 = vmatprep.subr.mxu0 0.0
    %1173 = vmatpush1.msra.mxu0 0.0
    %1174 = vmatprep.subr.mxu0 0.0
    %1175 = vmatpush1.msra.mxu0 0.0
    %1176 = vmatprep.subr.mxu0 0.0
    %1177 = vmatpush1.msra.mxu0 0.0
    %1178 = vmatprep.subr.mxu0 0.0
    %1179 = vmatpush1.msra.mxu0 0.0
    %1180 = vmatprep.subr.mxu0 0.0
    %1181 = vmatpush1.msra.mxu0 0.0
    %1182 = vmatprep.subr.mxu0 0.0
    %1183 = vmatpush1.msra.mxu0 0.0
    %1184 = vmatprep.subr.mxu0 0.0
    %1185 = vmatpush1.msra.mxu0 0.0
    %1186 = vmatprep.subr.mxu0 0.0
    %1187 = vmatpush1.msra.mxu0 0.0
    %1188 = vmatprep.subr.mxu0 0.0
    %1189 = vmatpush1.msra.mxu0 0.0
    %1190 = vmatprep.subr.mxu0 0.0
    %1191 = vmatpush1.msra.mxu0 0.0
    %1192 = vmatprep.subr.mxu0 0.0
    %1193 = vmatpush1.msra.mxu0 0.0
    %1194 = vmatprep.subr.mxu0 0.0
    %1195 = vmatpush1.msra.mxu0 0.0
    %1196 = vmatprep.subr.mxu0 0.0
    %1197 = vmatpush1.msra.mxu0 0.0
    %1198 = vmatprep.subr.mxu0 0.0
    %1199 = vmatpush1.msra.mxu0 0.0
    %1200 = vmatprep.subr.mxu0 0.0
    %1201 = vmatpush1.msra.mxu0 0.0
    %1202 = vmatprep.subr.mxu0 0.0
    %1203 = vmatpush1.msra.mxu0 0.0
    %1204 = vmatprep.subr.mxu0 0.0
    %1205 = vmatpush1.msra.mxu0 0.0
    %1206 = vmatprep.subr.mxu0 0.0
    %1207 = vmatpush1.msra.mxu0 0.0
    %1208 = vmatprep.subr.mxu0 0.0
    %1209 = vmatpush1.msra.mxu0 0.0
    %1210 = vmatprep.subr.mxu0 0.0
    %1211 = vmatpush1.msra.mxu0 0.0
    %1212 = vmatprep.subr.mxu0 0.0
    %1213 = vmatpush1.msra.mxu0 0.0
    %1214 = vmatprep.subr.mxu0 0.0
    %1215 = vmatpush1.msra.mxu0 0.0
    %1216 = vmatprep.subr.mxu0 0.0
    %1217 = vmatpush1.msra.mxu0 0.0
    %1218 = vmatprep.subr.mxu0 0.0
    %1219 = vmatpush1.msra.mxu0 0.0
    %1220 = vmatprep.subr.mxu0 0.0
    %1221 = vmatpush1.msra.mxu0 0.0
    %1222 = vmatprep.subr.mxu0 0.0
    %1223 = vmatpush1.msra.mxu0 0.0
    %1224 = vmatprep.subr.mxu0 0.0
    %1225 = vmatpush1.msra.mxu0 0.0
    %1226 = vmatprep.subr.mxu0 0.0
    %1227 = vmatpush1.msra.mxu0 0.0
    %1228 = vmatprep.subr.mxu0 0.0
    %1229 = vmatpush1.msra.mxu0 0.0
    %1230 = vmatprep.mubr.f32.mxu0 0.0
    %1231 = vmatmul.mubr.f32.gmra.mrb[0].mxu0 %v1161
    %v1232 = vpop.f32.mrb[0].mxu0
    %v1233 = vadd.f32 0.0, %v1232
    %v1234 = vpop.f32.mrb[0].mxu0
    %1235 = vdwg.mxu0
    %v1236 = vadd.f32 %v1005, %v1081
    %v1237 = vadd.f32 %v1236, %v1157
    %v1238 = vadd.f32 %v1237, %v1233
    %v1239 = vld [vmem:[%s6] sm:$0x1]
    %v1241 = vlaneseq
    %v1242 = vshrl.u32 %v1241, 7
    %v1243 = vsub.s32 0, %v1242
    %v1244 = vrot.slane %v1239, %v1243
    %v1246 = vadd.f32 %v1238, %v1244
    %v1247 = vmax.f32 %v1246, 0.0
    %v1248 = vld [vmem:[%s1] sm:$0xff]
    %v1249 = vld [vmem:[%s1 + $0x8] sm:$0xff]
    %v1250 = vld [vmem:[%s1 + $0x10] sm:$0xff]
    %v1252 = vsel %vm32, %v1248, 0
    %1254 = vmatprep.subr.mxu0 0.0
    %1255 = vmatpush1.msra.mxu0 %v1247
    %1256 = vmatprep.subr.mxu0 0.0
    %1257 = vmatpush1.msra.mxu0 0.0
    %1258 = vmatprep.subr.mxu0 0.0
    %1259 = vmatpush1.msra.mxu0 0.0
    %1260 = vmatprep.subr.mxu0 0.0
    %1261 = vmatpush1.msra.mxu0 0.0
    %1262 = vmatprep.subr.mxu0 0.0
    %1263 = vmatpush1.msra.mxu0 0.0
    %1264 = vmatprep.subr.mxu0 0.0
    %1265 = vmatpush1.msra.mxu0 0.0
    %1266 = vmatprep.subr.mxu0 0.0
    %1267 = vmatpush1.msra.mxu0 0.0
    %1268 = vmatprep.subr.mxu0 0.0
    %1269 = vmatpush1.msra.mxu0 0.0
    %1270 = vmatprep.subr.mxu0 0.0
    %1271 = vmatpush1.msra.mxu0 0.0
    %1272 = vmatprep.subr.mxu0 0.0
    %1273 = vmatpush1.msra.mxu0 0.0
    %1274 = vmatprep.subr.mxu0 0.0
    %1275 = vmatpush1.msra.mxu0 0.0
    %1276 = vmatprep.subr.mxu0 0.0
    %1277 = vmatpush1.msra.mxu0 0.0
    %1278 = vmatprep.subr.mxu0 0.0
    %1279 = vmatpush1.msra.mxu0 0.0
    %1280 = vmatprep.subr.mxu0 0.0
    %1281 = vmatpush1.msra.mxu0 0.0
    %1282 = vmatprep.subr.mxu0 0.0
    %1283 = vmatpush1.msra.mxu0 0.0
    %1284 = vmatprep.subr.mxu0 0.0
    %1285 = vmatpush1.msra.mxu0 0.0
    %1286 = vmatprep.subr.mxu0 0.0
    %1287 = vmatpush1.msra.mxu0 0.0
    %1288 = vmatprep.subr.mxu0 0.0
    %1289 = vmatpush1.msra.mxu0 0.0
    %1290 = vmatprep.subr.mxu0 0.0
    %1291 = vmatpush1.msra.mxu0 0.0
    %1292 = vmatprep.subr.mxu0 0.0
    %1293 = vmatpush1.msra.mxu0 0.0
    %1294 = vmatprep.subr.mxu0 0.0
    %1295 = vmatpush1.msra.mxu0 0.0
    %1296 = vmatprep.subr.mxu0 0.0
    %1297 = vmatpush1.msra.mxu0 0.0
    %1298 = vmatprep.subr.mxu0 0.0
    %1299 = vmatpush1.msra.mxu0 0.0
    %1300 = vmatprep.subr.mxu0 0.0
    %1301 = vmatpush1.msra.mxu0 0.0
    %1302 = vmatprep.subr.mxu0 0.0
    %1303 = vmatpush1.msra.mxu0 0.0
    %1304 = vmatprep.subr.mxu0 0.0
    %1305 = vmatpush1.msra.mxu0 0.0
    %1306 = vmatprep.subr.mxu0 0.0
    %1307 = vmatpush1.msra.mxu0 0.0
    %1308 = vmatprep.subr.mxu0 0.0
    %1309 = vmatpush1.msra.mxu0 0.0
    %1310 = vmatprep.subr.mxu0 0.0
    %1311 = vmatpush1.msra.mxu0 0.0
    %1312 = vmatprep.subr.mxu0 0.0
    %1313 = vmatpush1.msra.mxu0 0.0
    %1314 = vmatprep.subr.mxu0 0.0
    %1315 = vmatpush1.msra.mxu0 0.0
    %1316 = vmatprep.subr.mxu0 0.0
    %1317 = vmatpush1.msra.mxu0 0.0
    %1318 = vmatprep.mubr.f32.mxu0 0.0
    %1319 = vmatmul.mubr.f32.gmra.mrb[0].mxu0 %v1252
    %v1320 = vpop.f32.mrb[0].mxu0
    %v1321 = vadd.f32 0.0, %v1320
    %v1322 = vpop.f32.mrb[0].mxu0
    %1323 = vdwg.mxu0
    %v1325 = vsel %vm32, %v1249, 0
    %1327 = vmatprep.subr.mxu0 0.0
    %1328 = vmatpush1.msra.mxu0 %v1247
    %1329 = vmatprep.subr.mxu0 0.0
    %1330 = vmatpush1.msra.mxu0 0.0
    %1331 = vmatprep.subr.mxu0 0.0
    %1332 = vmatpush1.msra.mxu0 0.0
    %1333 = vmatprep.subr.mxu0 0.0
    %1334 = vmatpush1.msra.mxu0 0.0
    %1335 = vmatprep.subr.mxu0 0.0
    %1336 = vmatpush1.msra.mxu0 0.0
    %1337 = vmatprep.subr.mxu0 0.0
    %1338 = vmatpush1.msra.mxu0 0.0
    %1339 = vmatprep.subr.mxu0 0.0
    %1340 = vmatpush1.msra.mxu0 0.0
    %1341 = vmatprep.subr.mxu0 0.0
    %1342 = vmatpush1.msra.mxu0 0.0
    %1343 = vmatprep.subr.mxu0 0.0
    %1344 = vmatpush1.msra.mxu0 0.0
    %1345 = vmatprep.subr.mxu0 0.0
    %1346 = vmatpush1.msra.mxu0 0.0
    %1347 = vmatprep.subr.mxu0 0.0
    %1348 = vmatpush1.msra.mxu0 0.0
    %1349 = vmatprep.subr.mxu0 0.0
    %1350 = vmatpush1.msra.mxu0 0.0
    %1351 = vmatprep.subr.mxu0 0.0
    %1352 = vmatpush1.msra.mxu0 0.0
    %1353 = vmatprep.subr.mxu0 0.0
    %1354 = vmatpush1.msra.mxu0 0.0
    %1355 = vmatprep.subr.mxu0 0.0
    %1356 = vmatpush1.msra.mxu0 0.0
    %1357 = vmatprep.subr.mxu0 0.0
    %1358 = vmatpush1.msra.mxu0 0.0
    %1359 = vmatprep.subr.mxu0 0.0
    %1360 = vmatpush1.msra.mxu0 0.0
    %1361 = vmatprep.subr.mxu0 0.0
    %1362 = vmatpush1.msra.mxu0 0.0
    %1363 = vmatprep.subr.mxu0 0.0
    %1364 = vmatpush1.msra.mxu0 0.0
    %1365 = vmatprep.subr.mxu0 0.0
    %1366 = vmatpush1.msra.mxu0 0.0
    %1367 = vmatprep.subr.mxu0 0.0
    %1368 = vmatpush1.msra.mxu0 0.0
    %1369 = vmatprep.subr.mxu0 0.0
    %1370 = vmatpush1.msra.mxu0 0.0
    %1371 = vmatprep.subr.mxu0 0.0
    %1372 = vmatpush1.msra.mxu0 0.0
    %1373 = vmatprep.subr.mxu0 0.0
    %1374 = vmatpush1.msra.mxu0 0.0
    %1375 = vmatprep.subr.mxu0 0.0
    %1376 = vmatpush1.msra.mxu0 0.0
    %1377 = vmatprep.subr.mxu0 0.0
    %1378 = vmatpush1.msra.mxu0 0.0
    %1379 = vmatprep.subr.mxu0 0.0
    %1380 = vmatpush1.msra.mxu0 0.0
    %1381 = vmatprep.subr.mxu0 0.0
    %1382 = vmatpush1.msra.mxu0 0.0
    %1383 = vmatprep.subr.mxu0 0.0
    %1384 = vmatpush1.msra.mxu0 0.0
    %1385 = vmatprep.subr.mxu0 0.0
    %1386 = vmatpush1.msra.mxu0 0.0
    %1387 = vmatprep.subr.mxu0 0.0
    %1388 = vmatpush1.msra.mxu0 0.0
    %1389 = vmatprep.subr.mxu0 0.0
    %1390 = vmatpush1.msra.mxu0 0.0
    %1391 = vmatprep.mubr.f32.mxu0 0.0
    %1392 = vmatmul.mubr.f32.gmra.mrb[0].mxu0 %v1325
    %v1393 = vpop.f32.mrb[0].mxu0
    %v1394 = vadd.f32 0.0, %v1393
    %v1395 = vpop.f32.mrb[0].mxu0
    %1396 = vdwg.mxu0
    %v1398 = vsel %vm32, %v1250, 0
    %1400 = vmatprep.subr.mxu0 0.0
    %1401 = vmatpush1.msra.mxu0 %v1247
    %1402 = vmatprep.subr.mxu0 0.0
    %1403 = vmatpush1.msra.mxu0 0.0
    %1404 = vmatprep.subr.mxu0 0.0
    %1405 = vmatpush1.msra.mxu0 0.0
    %1406 = vmatprep.subr.mxu0 0.0
    %1407 = vmatpush1.msra.mxu0 0.0
    %1408 = vmatprep.subr.mxu0 0.0
    %1409 = vmatpush1.msra.mxu0 0.0
    %1410 = vmatprep.subr.mxu0 0.0
    %1411 = vmatpush1.msra.mxu0 0.0
    %1412 = vmatprep.subr.mxu0 0.0
    %1413 = vmatpush1.msra.mxu0 0.0
    %1414 = vmatprep.subr.mxu0 0.0
    %1415 = vmatpush1.msra.mxu0 0.0
    %1416 = vmatprep.subr.mxu0 0.0
    %1417 = vmatpush1.msra.mxu0 0.0
    %1418 = vmatprep.subr.mxu0 0.0
    %1419 = vmatpush1.msra.mxu0 0.0
    %1420 = vmatprep.subr.mxu0 0.0
    %1421 = vmatpush1.msra.mxu0 0.0
    %1422 = vmatprep.subr.mxu0 0.0
    %1423 = vmatpush1.msra.mxu0 0.0
    %1424 = vmatprep.subr.mxu0 0.0
    %1425 = vmatpush1.msra.mxu0 0.0
    %1426 = vmatprep.subr.mxu0 0.0
    %1427 = vmatpush1.msra.mxu0 0.0
    %1428 = vmatprep.subr.mxu0 0.0
    %1429 = vmatpush1.msra.mxu0 0.0
    %1430 = vmatprep.subr.mxu0 0.0
    %1431 = vmatpush1.msra.mxu0 0.0
    %1432 = vmatprep.subr.mxu0 0.0
    %1433 = vmatpush1.msra.mxu0 0.0
    %1434 = vmatprep.subr.mxu0 0.0
    %1435 = vmatpush1.msra.mxu0 0.0
    %1436 = vmatprep.subr.mxu0 0.0
    %1437 = vmatpush1.msra.mxu0 0.0
    %1438 = vmatprep.subr.mxu0 0.0
    %1439 = vmatpush1.msra.mxu0 0.0
    %1440 = vmatprep.subr.mxu0 0.0
    %1441 = vmatpush1.msra.mxu0 0.0
    %1442 = vmatprep.subr.mxu0 0.0
    %1443 = vmatpush1.msra.mxu0 0.0
    %1444 = vmatprep.subr.mxu0 0.0
    %1445 = vmatpush1.msra.mxu0 0.0
    %1446 = vmatprep.subr.mxu0 0.0
    %1447 = vmatpush1.msra.mxu0 0.0
    %1448 = vmatprep.subr.mxu0 0.0
    %1449 = vmatpush1.msra.mxu0 0.0
    %1450 = vmatprep.subr.mxu0 0.0
    %1451 = vmatpush1.msra.mxu0 0.0
    %1452 = vmatprep.subr.mxu0 0.0
    %1453 = vmatpush1.msra.mxu0 0.0
    %1454 = vmatprep.subr.mxu0 0.0
    %1455 = vmatpush1.msra.mxu0 0.0
    %1456 = vmatprep.subr.mxu0 0.0
    %1457 = vmatpush1.msra.mxu0 0.0
    %1458 = vmatprep.subr.mxu0 0.0
    %1459 = vmatpush1.msra.mxu0 0.0
    %1460 = vmatprep.subr.mxu0 0.0
    %1461 = vmatpush1.msra.mxu0 0.0
    %1462 = vmatprep.subr.mxu0 0.0
    %1463 = vmatpush1.msra.mxu0 0.0
    %1464 = vmatprep.mubr.f32.mxu0 0.0
    %1465 = vmatmul.mubr.f32.gmra.mrb[0].mxu0 %v1398
    %v1466 = vpop.f32.mrb[0].mxu0
    %v1467 = vadd.f32 0.0, %v1466
    %v1468 = vpop.f32.mrb[0].mxu0
    %1469 = vdwg.mxu0
    %1470 = vmatprep.subr.mxu0 0.0
    %1471 = vmatpush1.msra.mxu0 %v1321
    %1472 = vmatprep.subr.mxu0 0.0
    %1473 = vmatpush1.msra.mxu0 0.0
    %1474 = vmatprep.subr.mxu0 0.0
    %1475 = vmatpush1.msra.mxu0 0.0
    %1476 = vmatprep.subr.mxu0 0.0
    %1477 = vmatpush1.msra.mxu0 0.0
    %1478 = vmatprep.subr.mxu0 0.0
    %1479 = vmatpush1.msra.mxu0 0.0
    %1480 = vmatprep.subr.mxu0 0.0
    %1481 = vmatpush1.msra.mxu0 0.0
    %1482 = vmatprep.subr.mxu0 0.0
    %1483 = vmatpush1.msra.mxu0 0.0
    %1484 = vmatprep.subr.mxu0 0.0
    %1485 = vmatpush1.msra.mxu0 0.0
    %1486 = vmatprep.subr.mxu0 0.0
    %1487 = vmatpush1.msra.mxu0 0.0
    %1488 = vmatprep.subr.mxu0 0.0
    %1489 = vmatpush1.msra.mxu0 0.0
    %1490 = vmatprep.subr.mxu0 0.0
    %1491 = vmatpush1.msra.mxu0 0.0
    %1492 = vmatprep.subr.mxu0 0.0
    %1493 = vmatpush1.msra.mxu0 0.0
    %1494 = vmatprep.subr.mxu0 0.0
    %1495 = vmatpush1.msra.mxu0 0.0
    %1496 = vmatprep.subr.mxu0 0.0
    %1497 = vmatpush1.msra.mxu0 0.0
    %1498 = vmatprep.subr.mxu0 0.0
    %1499 = vmatpush1.msra.mxu0 0.0
    %1500 = vmatprep.subr.mxu0 0.0
    %1501 = vmatpush1.msra.mxu0 0.0
    %1502 = vmatprep.subr.mxu0 0.0
    %1503 = vmatpush1.msra.mxu0 0.0
    %1504 = vmatprep.subr.mxu0 0.0
    %1505 = vmatpush1.msra.mxu0 0.0
    %1506 = vmatprep.subr.mxu0 0.0
    %1507 = vmatpush1.msra.mxu0 0.0
    %1508 = vmatprep.subr.mxu0 0.0
    %1509 = vmatpush1.msra.mxu0 0.0
    %1510 = vmatprep.subr.mxu0 0.0
    %1511 = vmatpush1.msra.mxu0 0.0
    %1512 = vmatprep.subr.mxu0 0.0
    %1513 = vmatpush1.msra.mxu0 0.0
    %1514 = vmatprep.subr.mxu0 0.0
    %1515 = vmatpush1.msra.mxu0 0.0
    %1516 = vmatprep.subr.mxu0 0.0
    %1517 = vmatpush1.msra.mxu0 0.0
    %1518 = vmatprep.subr.mxu0 0.0
    %1519 = vmatpush1.msra.mxu0 0.0
    %1520 = vmatprep.subr.mxu0 0.0
    %1521 = vmatpush1.msra.mxu0 0.0
    %1522 = vmatprep.subr.mxu0 0.0
    %1523 = vmatpush1.msra.mxu0 0.0
    %1524 = vmatprep.subr.mxu0 0.0
    %1525 = vmatpush1.msra.mxu0 0.0
    %1526 = vmatprep.subr.mxu0 0.0
    %1527 = vmatpush1.msra.mxu0 0.0
    %1528 = vmatprep.subr.mxu0 0.0
    %1529 = vmatpush1.msra.mxu0 0.0
    %1530 = vmatprep.subr.mxu0 0.0
    %1531 = vmatpush1.msra.mxu0 0.0
    %1532 = vmatprep.subr.mxu0 0.0
    %1533 = vmatpush1.msra.mxu0 0.0
    %1534 = vmatprep.mubr.f32.mxu0 0.0
    %1535 = vmatmul.mubr.f32.gmra.mrb[0].mxu0 %v1252
    %v1536 = vpop.f32.mrb[0].mxu0
    %v1537 = vadd.f32 0.0, %v1536
    %v1538 = vpop.f32.mrb[0].mxu0
    %1539 = vdwg.mxu0
    %1540 = vmatprep.subr.mxu0 0.0
    %1541 = vmatpush1.msra.mxu0 %v1394
    %1542 = vmatprep.subr.mxu0 0.0
    %1543 = vmatpush1.msra.mxu0 0.0
    %1544 = vmatprep.subr.mxu0 0.0
    %1545 = vmatpush1.msra.mxu0 0.0
    %1546 = vmatprep.subr.mxu0 0.0
    %1547 = vmatpush1.msra.mxu0 0.0
    %1548 = vmatprep.subr.mxu0 0.0
    %1549 = vmatpush1.msra.mxu0 0.0
    %1550 = vmatprep.subr.mxu0 0.0
    %1551 = vmatpush1.msra.mxu0 0.0
    %1552 = vmatprep.subr.mxu0 0.0
    %1553 = vmatpush1.msra.mxu0 0.0
    %1554 = vmatprep.subr.mxu0 0.0
    %1555 = vmatpush1.msra.mxu0 0.0
    %1556 = vmatprep.subr.mxu0 0.0
    %1557 = vmatpush1.msra.mxu0 0.0
    %1558 = vmatprep.subr.mxu0 0.0
    %1559 = vmatpush1.msra.mxu0 0.0
    %1560 = vmatprep.subr.mxu0 0.0
    %1561 = vmatpush1.msra.mxu0 0.0
    %1562 = vmatprep.subr.mxu0 0.0
    %1563 = vmatpush1.msra.mxu0 0.0
    %1564 = vmatprep.subr.mxu0 0.0
    %1565 = vmatpush1.msra.mxu0 0.0
    %1566 = vmatprep.subr.mxu0 0.0
    %1567 = vmatpush1.msra.mxu0 0.0
    %1568 = vmatprep.subr.mxu0 0.0
    %1569 = vmatpush1.msra.mxu0 0.0
    %1570 = vmatprep.subr.mxu0 0.0
    %1571 = vmatpush1.msra.mxu0 0.0
    %1572 = vmatprep.subr.mxu0 0.0
    %1573 = vmatpush1.msra.mxu0 0.0
    %1574 = vmatprep.subr.mxu0 0.0
    %1575 = vmatpush1.msra.mxu0 0.0
    %1576 = vmatprep.subr.mxu0 0.0
    %1577 = vmatpush1.msra.mxu0 0.0
    %1578 = vmatprep.subr.mxu0 0.0
    %1579 = vmatpush1.msra.mxu0 0.0
    %1580 = vmatprep.subr.mxu0 0.0
    %1581 = vmatpush1.msra.mxu0 0.0
    %1582 = vmatprep.subr.mxu0 0.0
    %1583 = vmatpush1.msra.mxu0 0.0
    %1584 = vmatprep.subr.mxu0 0.0
    %1585 = vmatpush1.msra.mxu0 0.0
    %1586 = vmatprep.subr.mxu0 0.0
    %1587 = vmatpush1.msra.mxu0 0.0
    %1588 = vmatprep.subr.mxu0 0.0
    %1589 = vmatpush1.msra.mxu0 0.0
    %1590 = vmatprep.subr.mxu0 0.0
    %1591 = vmatpush1.msra.mxu0 0.0
    %1592 = vmatprep.subr.mxu0 0.0
    %1593 = vmatpush1.msra.mxu0 0.0
    %1594 = vmatprep.subr.mxu0 0.0
    %1595 = vmatpush1.msra.mxu0 0.0
    %1596 = vmatprep.subr.mxu0 0.0
    %1597 = vmatpush1.msra.mxu0 0.0
    %1598 = vmatprep.subr.mxu0 0.0
    %1599 = vmatpush1.msra.mxu0 0.0
    %1600 = vmatprep.subr.mxu0 0.0
    %1601 = vmatpush1.msra.mxu0 0.0
    %1602 = vmatprep.subr.mxu0 0.0
    %1603 = vmatpush1.msra.mxu0 0.0
    %1604 = vmatprep.mubr.f32.mxu0 0.0
    %1605 = vmatmul.mubr.f32.gmra.mrb[0].mxu0 %v1325
    %v1606 = vpop.f32.mrb[0].mxu0
    %v1607 = vadd.f32 0.0, %v1606
    %v1608 = vpop.f32.mrb[0].mxu0
    %1609 = vdwg.mxu0
    %1610 = vmatprep.subr.mxu0 0.0
    %1611 = vmatpush1.msra.mxu0 %v1467
    %1612 = vmatprep.subr.mxu0 0.0
    %1613 = vmatpush1.msra.mxu0 0.0
    %1614 = vmatprep.subr.mxu0 0.0
    %1615 = vmatpush1.msra.mxu0 0.0
    %1616 = vmatprep.subr.mxu0 0.0
    %1617 = vmatpush1.msra.mxu0 0.0
    %1618 = vmatprep.subr.mxu0 0.0
    %1619 = vmatpush1.msra.mxu0 0.0
    %1620 = vmatprep.subr.mxu0 0.0
    %1621 = vmatpush1.msra.mxu0 0.0
    %1622 = vmatprep.subr.mxu0 0.0
    %1623 = vmatpush1.msra.mxu0 0.0
    %1624 = vmatprep.subr.mxu0 0.0
    %1625 = vmatpush1.msra.mxu0 0.0
    %1626 = vmatprep.subr.mxu0 0.0
    %1627 = vmatpush1.msra.mxu0 0.0
    %1628 = vmatprep.subr.mxu0 0.0
    %1629 = vmatpush1.msra.mxu0 0.0
    %1630 = vmatprep.subr.mxu0 0.0
    %1631 = vmatpush1.msra.mxu0 0.0
    %1632 = vmatprep.subr.mxu0 0.0
    %1633 = vmatpush1.msra.mxu0 0.0
    %1634 = vmatprep.subr.mxu0 0.0
    %1635 = vmatpush1.msra.mxu0 0.0
    %1636 = vmatprep.subr.mxu0 0.0
    %1637 = vmatpush1.msra.mxu0 0.0
    %1638 = vmatprep.subr.mxu0 0.0
    %1639 = vmatpush1.msra.mxu0 0.0
    %1640 = vmatprep.subr.mxu0 0.0
    %1641 = vmatpush1.msra.mxu0 0.0
    %1642 = vmatprep.subr.mxu0 0.0
    %1643 = vmatpush1.msra.mxu0 0.0
    %1644 = vmatprep.subr.mxu0 0.0
    %1645 = vmatpush1.msra.mxu0 0.0
    %1646 = vmatprep.subr.mxu0 0.0
    %1647 = vmatpush1.msra.mxu0 0.0
    %1648 = vmatprep.subr.mxu0 0.0
    %1649 = vmatpush1.msra.mxu0 0.0
    %1650 = vmatprep.subr.mxu0 0.0
    %1651 = vmatpush1.msra.mxu0 0.0
    %1652 = vmatprep.subr.mxu0 0.0
    %1653 = vmatpush1.msra.mxu0 0.0
    %1654 = vmatprep.subr.mxu0 0.0
    %1655 = vmatpush1.msra.mxu0 0.0
    %1656 = vmatprep.subr.mxu0 0.0
    %1657 = vmatpush1.msra.mxu0 0.0
    %1658 = vmatprep.subr.mxu0 0.0
    %1659 = vmatpush1.msra.mxu0 0.0
    %1660 = vmatprep.subr.mxu0 0.0
    %1661 = vmatpush1.msra.mxu0 0.0
    %1662 = vmatprep.subr.mxu0 0.0
    %1663 = vmatpush1.msra.mxu0 0.0
    %1664 = vmatprep.subr.mxu0 0.0
    %1665 = vmatpush1.msra.mxu0 0.0
    %1666 = vmatprep.subr.mxu0 0.0
    %1667 = vmatpush1.msra.mxu0 0.0
    %1668 = vmatprep.subr.mxu0 0.0
    %1669 = vmatpush1.msra.mxu0 0.0
    %1670 = vmatprep.subr.mxu0 0.0
    %1671 = vmatpush1.msra.mxu0 0.0
    %1672 = vmatprep.subr.mxu0 0.0
    %1673 = vmatpush1.msra.mxu0 0.0
    %1674 = vmatprep.mubr.f32.mxu0 0.0
    %1675 = vmatmul.mubr.f32.gmra.mrb[0].mxu0 %v1398
    %v1676 = vpop.f32.mrb[0].mxu0
    %v1677 = vadd.f32 0.0, %v1676
    %v1678 = vpop.f32.mrb[0].mxu0
    %1679 = vdwg.mxu0
    %v1680 = vadd.f32 %v1537, %v1607
    %v1681 = vadd.f32 %v1680, %v1677
    %vm1682 = vcmask 130048
    %1683 = vst.msk [vmem:[#allocation2] sm:$0xff] %vm1682, %v1681
    // Predicated region
    $region30: #{tpu_custom_call.1} parent=1 // pred_check
      _
    $region31: #{tpu_custom_call.1} parent=1 // pred_check_branch
      %1685 = sbr.rel (0) target = $region33
    $region32: #{tpu_custom_call.1} parent=1 // pred_region
      %s1687 = ssub.s32 128, 128
      %1688 = vsyncadd [#allocation3], %s1687
      %s1690 = sshll.u32 [#allocation2], 4
      %s1691 = int_to_ptr.vmem [resolvable:$true] %s1690
      %1693 = dma.vmem_to_hbm [thread:$0]  %s1691, 128, %s7, [#allocation3]
    $region33: #{tpu_custom_call.1} parent=1 // pred_fallthru
      _
    // Predicated region
    $region34: #{tpu_custom_call.1} parent=1 // pred_check
      _
    $region35: #{tpu_custom_call.1} parent=1 // pred_check_branch
      %1695 = sbr.rel (0) target = $region37
    $region36: #{tpu_custom_call.1} parent=1 // pred_region
      %1696 = dma.done [#allocation3], 128
    $region37: #{tpu_custom_call.1} parent=1 // pred_fallthru
      _
    %1697 = vsyncpa [#allocation3], 1

</llo_original>
